<compile_context>
chip_gen: v5e
topology: v5e:2x2
jax: 0.10.0
libtpu: 0.0.40
codegen_flags: <defaults>
</compile_context>

<pallas_src>
import functools

import numpy as np
import jax
import jax.numpy as jnp
from jax import lax
from jax.experimental import pallas as pl
from jax.experimental.pallas import tpu as pltpu


# ----------------------------------------------------------------------------
# Fused ResBlock kernel (one grid step = one batch element)
# ----------------------------------------------------------------------------
def _resblock_kernel(p1_ref, xds_ref, w1_ref, w2c_ref, shift_ref, mask_ref,
                     o_ref, p2_ref, *, Ho, Wo):
    # p1_ref    : (K1p, S)        im2col patches of x for conv1 (zero-pad rows)
    # xds_ref   : (Kdp, S)        stride-2-sampled x for the 1x1 shortcut conv
    # w1_ref    : (C, K1p)        conv1 weights, BN1 scale folded, im2col layout
    # w2c_ref   : (C, 27*C+Kdp)   [conv2 | shortcut] weights, BN scales folded
    # shift_ref : (C, 2)          per-channel shifts: [bn1, bn2 + bn_ds]
    # mask_ref  : (32, S)         precomputed per-tap zero-padding masks
    # o_ref     : (C, S)          output slab, S = Do*Ho*Wo on the lane axis
    # p2_ref    : (27*C+Kdp, S)   scratch: merged conv2 im2col + shortcut rows
    C, S = o_ref.shape

    # ---- conv1 + bn1 + relu: one big-K matmul, lane-dense result ------------
    y1 = jnp.dot(w1_ref[...], p1_ref[...], preferred_element_type=jnp.float32)
    y1 = jnp.maximum(y1 + shift_ref[:, 0:1], 0.0)

    # ---- build conv2 ('same', stride 1) im2col patches in VMEM --------------
    # Spatial flattening is s = (do*Ho + ho)*Wo + wo, so the (dd, dh, dw)
    # neighbour of every output position is a lane roll by -(dd*Ho*Wo+dh*Wo+dw)
    # with out-of-range (zero-padding) lanes killed by a precomputed mask:
    # 1 XLU roll + 1 VPU multiply per tap.
    for tap in range(27):
        dd, dh, dw = tap // 9 - 1, (tap // 3) % 3 - 1, tap % 3 - 1
        off = (dd * Ho + dh) * Wo + dw
        src = y1 if off == 0 else pltpu.roll(y1, (-off) % S, axis=1)
        p2_ref[tap * C:(tap + 1) * C, :] = src * mask_ref[tap:tap + 1, :]

    # Shortcut (1x1x1 stride-2 conv) operand lives in the tail rows so that the
    # residual add is absorbed by the single merged matmul below.
    p2_ref[27 * C:, :] = xds_ref[...]

    # ---- conv2+bn2, downsample+bn AND residual add: ONE matmul --------------
    y2 = jnp.dot(w2c_ref[...], p2_ref[...], preferred_element_type=jnp.float32)
    o_ref[...] = jnp.maximum(y2 + shift_ref[:, 1:2], 0.0)


# ----------------------------------------------------------------------------
# Wrapper: BN folding, im2col layout prep, mask precompute, pallas_call
# ----------------------------------------------------------------------------
def _fold_bn(bias, gamma, beta, mean, var, eps=1e-5):
    scale = gamma / jnp.sqrt(var + eps)
    shift = (bias - mean) * scale + beta
    return scale, shift


def _im2col_conv1(x, stride=2):
    """x: [N, Cin, D, H, W] -> ([N, 27*Cin, Do*Ho*Wo], (Do, Ho, Wo))."""
    N, Cin, D, H, W = x.shape
    Do = (D + 2 - 3) // stride + 1
    Ho = (H + 2 - 3) // stride + 1
    Wo = (W + 2 - 3) // stride + 1
    xp = jnp.pad(x, ((0, 0), (0, 0), (1, 1), (1, 1), (1, 1)))
    taps = []
    for kd in range(3):
        for kh in range(3):
            for kw in range(3):
                sl = lax.slice(
                    xp, (0, 0, kd, kh, kw),
                    (N, Cin, kd + stride * (Do - 1) + 1,
                     kh + stride * (Ho - 1) + 1, kw + stride * (Wo - 1) + 1),
                    (1, 1, stride, stride, stride))
                taps.append(sl.reshape(N, Cin, Do * Ho * Wo))
    p = jnp.stack(taps, axis=1)                       # [N, 27, Cin, S]
    return p.reshape(N, 27 * Cin, Do * Ho * Wo), (Do, Ho, Wo)


def _tap_masks(Do, Ho, Wo, rows=32):
    """(rows, Do*Ho*Wo) f32 validity masks for the 27 conv2 taps (trace-time)."""
    s = np.arange(Do * Ho * Wo)
    wo, ho, do = s % Wo, (s // Wo) % Ho, s // (Ho * Wo)
    m = np.zeros((rows, Do * Ho * Wo), np.float32)
    for tap in range(27):
        dd, dh, dw = tap // 9 - 1, (tap // 3) % 3 - 1, tap % 3 - 1
        m[tap] = ((wo + dw >= 0) & (wo + dw < Wo)
                  & (ho + dh >= 0) & (ho + dh < Ho)
                  & (do + dd >= 0) & (do + dd < Do)).astype(np.float32)
    return jnp.asarray(m)


def resblock_forward(params, x):
    """x: [N, C0, D, H, W] -> [N, C1, ceil(D/2), ceil(H/2), ceil(W/2)]."""
    N, C0, D, H, W = x.shape
    C1 = params["w1"].shape[0]
    x = x.astype(jnp.float32)

    # ---- layout prep: im2col for conv1, strided gather for the shortcut -----
    p1, (Do, Ho, Wo) = _im2col_conv1(x, stride=2)
    S = Do * Ho * Wo
    assert S % 128 == 0, "lane-dense layout assumes Do*Ho*Wo % 128 == 0"
    K1 = 27 * C0
    K1p = ((K1 + 7) // 8) * 8               # sublane multiple, not 128
    p1 = jnp.pad(p1, ((0, 0), (0, K1p - K1), (0, 0)))

    Kdp = ((C0 + 7) // 8) * 8
    xds = x[:, :, ::2, ::2, ::2].reshape(N, C0, S)
    xds = jnp.pad(xds, ((0, 0), (0, Kdp - C0), (0, 0)))

    # ---- fold eval-mode BN (and conv biases) into weights + shifts ----------
    s1, t1 = _fold_bn(params["b1"], *params["bn1"])
    s2, t2 = _fold_bn(params["b2"], *params["bn2"])
    sd, td = _fold_bn(params["bds"], *params["bnds"])

    w1r = (params["w1"] * s1[:, None, None, None, None])
    w1r = w1r.transpose(0, 2, 3, 4, 1).reshape(C1, K1)
    w1r = jnp.pad(w1r, ((0, 0), (0, K1p - K1)))

    w2r = (params["w2"] * s2[:, None, None, None, None])
    w2r = w2r.transpose(0, 2, 3, 4, 1).reshape(C1, 27 * C1)
    wdr = params["wds"].reshape(C1, C0) * sd[:, None]
    wdr = jnp.pad(wdr, ((0, 0), (0, Kdp - C0)))
    w2c = jnp.concatenate([w2r, wdr], axis=1)          # (C1, 27*C1 + Kdp)

    shifts = jnp.stack([t1, t2 + td], axis=1).astype(jnp.float32)   # (C1, 2)
    masks = _tap_masks(Do, Ho, Wo)                                   # (32, S)

    K2 = 27 * C1 + Kdp
    flops = int(2 * N * S * C1 * (K1 + K2))
    bytes_accessed = int(4 * (p1.size + xds.size + w1r.size + w2c.size
                              + shifts.size + masks.size + N * C1 * S))

    kernel = functools.partial(_resblock_kernel, Ho=Ho, Wo=Wo)
    out = pl.pallas_call(
        kernel,
        out_shape=jax.ShapeDtypeStruct((N, C1, S), jnp.float32),
        grid_spec=pltpu.PrefetchScalarGridSpec(
            num_scalar_prefetch=0,
            grid=(N,),                      # even extent -> both v7x TCs busy
            in_specs=[
                pl.BlockSpec((None, K1p, S), lambda n: (n, 0, 0)),
                pl.BlockSpec((None, Kdp, S), lambda n: (n, 0, 0)),
                pl.BlockSpec((C1, K1p), lambda n: (0, 0)),
                pl.BlockSpec((C1, K2), lambda n: (0, 0)),
                pl.BlockSpec((C1, 2), lambda n: (0, 0)),
                pl.BlockSpec((32, S), lambda n: (0, 0)),
            ],
            out_specs=pl.BlockSpec((None, C1, S), lambda n: (n, 0, 0)),
            scratch_shapes=[pltpu.VMEM((K2, S), jnp.float32)],
        ),
        compiler_params=pltpu.CompilerParams(
            dimension_semantics=("parallel",)),
        cost_estimate=pl.CostEstimate(flops=flops, transcendentals=0,
                                      bytes_accessed=bytes_accessed),
    )(p1, xds, w1r, w2c, shifts, masks)

    return out.reshape(N, C1, Do, Ho, Wo)


# ----------------------------------------------------------------------------
# Pure-JAX reference (lax.conv), same eval-mode BN math
# ----------------------------------------------------------------------------
def resblock_reference(params, x):
    dn = ("NCDHW", "OIDHW", "NCDHW")

    def conv_bn(x_, w, b, bn, stride, pad):
        y = lax.conv_general_dilated(
            x_, w, window_strides=(stride,) * 3, padding=((pad, pad),) * 3,
            dimension_numbers=dn)
        scale, shift = _fold_bn(b, *bn)
        return y * scale.reshape(1, -1, 1, 1, 1) + shift.reshape(1, -1, 1, 1, 1)

    x = x.astype(jnp.float32)
    out = jnp.maximum(
        conv_bn(x, params["w1"], params["b1"], params["bn1"], 2, 1), 0.0)
    out = conv_bn(out, params["w2"], params["b2"], params["bn2"], 1, 1)
    idn = conv_bn(x, params["wds"], params["bds"], params["bnds"], 2, 0)
    return jnp.maximum(out + idn, 0.0)


# ----------------------------------------------------------------------------
# Deterministic synthetic parameters
# ----------------------------------------------------------------------------
def make_params(key, channels=(4, 8)):
    c0, c1 = channels
    ks = jax.random.split(key, 18)

    def conv_w(k, cout, cin, ksz):
        fan_in = cin * ksz ** 3
        return (jax.random.normal(k, (cout, cin, ksz, ksz, ksz), jnp.float32)
                / jnp.sqrt(jnp.float32(fan_in)))

    def bn(kg, kb, km, kv, c):
        gamma = 1.0 + 0.1 * jax.random.normal(kg, (c,), jnp.float32)
        beta = 0.1 * jax.random.normal(kb, (c,), jnp.float32)
        mean = 0.1 * jax.random.normal(km, (c,), jnp.float32)
        var = jnp.abs(jax.random.normal(kv, (c,), jnp.float32)) + 0.5
        return gamma, beta, mean, var

    return {
        "w1": conv_w(ks[0], c1, c0, 3),
        "b1": 0.1 * jax.random.normal(ks[1], (c1,), jnp.float32),
        "bn1": bn(ks[2], ks[3], ks[4], ks[5], c1),
        "w2": conv_w(ks[6], c1, c1, 3),
        "b2": 0.1 * jax.random.normal(ks[7], (c1,), jnp.float32),
        "bn2": bn(ks[8], ks[9], ks[10], ks[11], c1),
        "wds": conv_w(ks[12], c1, c0, 1),
        "bds": 0.1 * jax.random.normal(ks[13], (c1,), jnp.float32),
        "bnds": bn(ks[14], ks[15], ks[16], ks[17], c1),
    }


# ----------------------------------------------------------------------------
if __name__ == "__main__":
    key = jax.random.PRNGKey(0)
    k_param, k_x = jax.random.split(key)

    channels = (4, 8)                       # (channels[0], channels[1])
    params = make_params(k_param, channels)

    n, d, h, w = 2, 8, 16, 16               # x: [N, C0, D, H, W]
    x = jax.random.normal(k_x, (n, channels[0], d, h, w), jnp.float32)

    out = jax.jit(functools.partial(resblock_forward, params))(x)
    out = jax.block_until_ready(out)

    ref = jax.block_until_ready(resblock_reference(params, x))

    assert out.shape == (n, channels[1], d // 2, h // 2, w // 2), out.shape
    max_err = float(jnp.max(jnp.abs(out - ref)))
    assert jnp.allclose(out, ref, rtol=1e-3, atol=1e-3), max_err

    print("KERNEL_OK")
</pallas_src>

<mosaic_0001>
module attributes {stable_mosaic.version = 11 : i64} {
  func.func @_resblock_kernel(%arg0: i32, %arg1: memref<1x112x256xf32, #tpu.memory_space<vmem>>, %arg2: memref<1x8x256xf32, #tpu.memory_space<vmem>>, %arg3: memref<8x112xf32, #tpu.memory_space<vmem>>, %arg4: memref<8x224xf32, #tpu.memory_space<vmem>>, %arg5: memref<8x2xf32, #tpu.memory_space<vmem>>, %arg6: memref<32x256xf32, #tpu.memory_space<vmem>>, %arg7: memref<1x8x256xf32, #tpu.memory_space<vmem>>, %arg8: memref<224x256xf32, #tpu.memory_space<vmem>>) attributes {dimension_semantics = [#tpu.dimension_semantics<parallel>], iteration_bounds = array<i64: 2>, scalar_prefetch = 0 : i64, scratch_operands = 1 : i64, tpu.core_type = #tpu.core_type<tc>, window_params = [{transform_indices = @transform_0, window_bounds = array<i64: 1, 112, 256>}, {transform_indices = @transform_1, window_bounds = array<i64: 1, 8, 256>}, {pipeline_mode = #tpu.pipeline_mode<synchronous>, transform_indices = @transform_2, window_bounds = array<i64: 8, 112>}, {pipeline_mode = #tpu.pipeline_mode<synchronous>, transform_indices = @transform_3, window_bounds = array<i64: 8, 224>}, {pipeline_mode = #tpu.pipeline_mode<synchronous>, transform_indices = @transform_4, window_bounds = array<i64: 8, 2>}, {pipeline_mode = #tpu.pipeline_mode<synchronous>, transform_indices = @transform_5, window_bounds = array<i64: 32, 256>}, {transform_indices = @transform_6, window_bounds = array<i64: 1, 8, 256>}]} {
    %c0 = arith.constant 0 : index
    %c0_0 = arith.constant 0 : index
    %0 = vector.load %arg3[%c0, %c0_0] : memref<8x112xf32, #tpu.memory_space<vmem>>, vector<8x112xf32>
    %c0_1 = arith.constant 0 : index
    %c0_2 = arith.constant 0 : index
    %c0_3 = arith.constant 0 : index
    %1 = vector.load %arg1[%c0_1, %c0_2, %c0_3] : memref<1x112x256xf32, #tpu.memory_space<vmem>>, vector<1x112x256xf32>
    %2 = vector.shape_cast %1 : vector<1x112x256xf32> to vector<112x256xf32>
    %cst = arith.constant dense<0.000000e+00> : vector<8x256xf32>
    %3 = tpu.matmul %0, %2, %cst {dimension_numbers = #tpu.dot_dimension_numbers<[1], [0], [0], [1], [0, 0, 1, 1], [], []>} : vector<8x112xf32>, vector<112x256xf32>, vector<8x256xf32> -> vector<8x256xf32>
    %c0_4 = arith.constant 0 : index
    %c0_5 = arith.constant 0 : index
    %4 = vector.load %arg5[%c0_4, %c0_5] : memref<8x2xf32, #tpu.memory_space<vmem>>, vector<8x1xf32>
    %5 = vector.broadcast %4 : vector<8x1xf32> to vector<8x256xf32>
    %6 = arith.addf %3, %5 : vector<8x256xf32>
    %cst_6 = arith.constant 0.000000e+00 : f32
    %7 = vector.broadcast %cst_6 : f32 to vector<8x256xf32>
    %8 = arith.maximumf %6, %7 : vector<8x256xf32>
    %c73_i32 = arith.constant 73 : i32
    %9 = tpu.dynamic_rotate %8 by %c73_i32 dim 1 : vector<8x256xf32>, i32 -> vector<8x256xf32>
    %c0_7 = arith.constant 0 : index
    %c0_8 = arith.constant 0 : index
    %10 = vector.load %arg6[%c0_7, %c0_8] : memref<32x256xf32, #tpu.memory_space<vmem>>, vector<1x256xf32>
    %11 = vector.broadcast %10 : vector<1x256xf32> to vector<8x256xf32>
    %12 = arith.mulf %9, %11 : vector<8x256xf32>
    %c0_9 = arith.constant 0 : index
    %c0_10 = arith.constant 0 : index
    %13 = vector.load %arg8[%c0_9, %c0_10] : memref<224x256xf32, #tpu.memory_space<vmem>>, vector<8x256xf32>
    tpu.vector_store %arg8[%c0_9, %c0_10], %12 {strides = array<i32>} : memref<224x256xf32, #tpu.memory_space<vmem>>, vector<8x256xf32>,
    %c72_i32 = arith.constant 72 : i32
    %14 = tpu.dynamic_rotate %8 by %c72_i32 dim 1 : vector<8x256xf32>, i32 -> vector<8x256xf32>
    %c1 = arith.constant 1 : index
    %c0_11 = arith.constant 0 : index
    %15 = vector.load %arg6[%c1, %c0_11] : memref<32x256xf32, #tpu.memory_space<vmem>>, vector<1x256xf32>
    %16 = vector.broadcast %15 : vector<1x256xf32> to vector<8x256xf32>
    %17 = arith.mulf %14, %16 : vector<8x256xf32>
    %c8 = arith.constant 8 : index
    %c0_12 = arith.constant 0 : index
    %18 = vector.load %arg8[%c8, %c0_12] : memref<224x256xf32, #tpu.memory_space<vmem>>, vector<8x256xf32>
    tpu.vector_store %arg8[%c8, %c0_12], %17 {strides = array<i32>} : memref<224x256xf32, #tpu.memory_space<vmem>>, vector<8x256xf32>,
    %c71_i32 = arith.constant 71 : i32
    %19 = tpu.dynamic_rotate %8 by %c71_i32 dim 1 : vector<8x256xf32>, i32 -> vector<8x256xf32>
    %c2 = arith.constant 2 : index
    %c0_13 = arith.constant 0 : index
    %20 = vector.load %arg6[%c2, %c0_13] : memref<32x256xf32, #tpu.memory_space<vmem>>, vector<1x256xf32>
    %21 = vector.broadcast %20 : vector<1x256xf32> to vector<8x256xf32>
    %22 = arith.mulf %19, %21 : vector<8x256xf32>
    %c16 = arith.constant 16 : index
    %c0_14 = arith.constant 0 : index
    %23 = vector.load %arg8[%c16, %c0_14] : memref<224x256xf32, #tpu.memory_space<vmem>>, vector<8x256xf32>
    tpu.vector_store %arg8[%c16, %c0_14], %22 {strides = array<i32>} : memref<224x256xf32, #tpu.memory_space<vmem>>, vector<8x256xf32>,
    %c65_i32 = arith.constant 65 : i32
    %24 = tpu.dynamic_rotate %8 by %c65_i32 dim 1 : vector<8x256xf32>, i32 -> vector<8x256xf32>
    %c3 = arith.constant 3 : index
    %c0_15 = arith.constant 0 : index
    %25 = vector.load %arg6[%c3, %c0_15] : memref<32x256xf32, #tpu.memory_space<vmem>>, vector<1x256xf32>
    %26 = vector.broadcast %25 : vector<1x256xf32> to vector<8x256xf32>
    %27 = arith.mulf %24, %26 : vector<8x256xf32>
    %c24 = arith.constant 24 : index
    %c0_16 = arith.constant 0 : index
    %28 = vector.load %arg8[%c24, %c0_16] : memref<224x256xf32, #tpu.memory_space<vmem>>, vector<8x256xf32>
    tpu.vector_store %arg8[%c24, %c0_16], %27 {strides = array<i32>} : memref<224x256xf32, #tpu.memory_space<vmem>>, vector<8x256xf32>,
    %c64_i32 = arith.constant 64 : i32
    %29 = tpu.dynamic_rotate %8 by %c64_i32 dim 1 : vector<8x256xf32>, i32 -> vector<8x256xf32>
    %c4 = arith.constant 4 : index
    %c0_17 = arith.constant 0 : index
    %30 = vector.load %arg6[%c4, %c0_17] : memref<32x256xf32, #tpu.memory_space<vmem>>, vector<1x256xf32>
    %31 = vector.broadcast %30 : vector<1x256xf32> to vector<8x256xf32>
    %32 = arith.mulf %29, %31 : vector<8x256xf32>
    %c32 = arith.constant 32 : index
    %c0_18 = arith.constant 0 : index
    %33 = vector.load %arg8[%c32, %c0_18] : memref<224x256xf32, #tpu.memory_space<vmem>>, vector<8x256xf32>
    tpu.vector_store %arg8[%c32, %c0_18], %32 {strides = array<i32>} : memref<224x256xf32, #tpu.memory_space<vmem>>, vector<8x256xf32>,
    %c63_i32 = arith.constant 63 : i32
    %34 = tpu.dynamic_rotate %8 by %c63_i32 dim 1 : vector<8x256xf32>, i32 -> vector<8x256xf32>
    %c5 = arith.constant 5 : index
    %c0_19 = arith.constant 0 : index
    %35 = vector.load %arg6[%c5, %c0_19] : memref<32x256xf32, #tpu.memory_space<vmem>>, vector<1x256xf32>
    %36 = vector.broadcast %35 : vector<1x256xf32> to vector<8x256xf32>
    %37 = arith.mulf %34, %36 : vector<8x256xf32>
    %c40 = arith.constant 40 : index
    %c0_20 = arith.constant 0 : index
    %38 = vector.load %arg8[%c40, %c0_20] : memref<224x256xf32, #tpu.memory_space<vmem>>, vector<8x256xf32>
    tpu.vector_store %arg8[%c40, %c0_20], %37 {strides = array<i32>} : memref<224x256xf32, #tpu.memory_space<vmem>>, vector<8x256xf32>,
    %c57_i32 = arith.constant 57 : i32
    %39 = tpu.dynamic_rotate %8 by %c57_i32 dim 1 : vector<8x256xf32>, i32 -> vector<8x256xf32>
    %c6 = arith.constant 6 : index
    %c0_21 = arith.constant 0 : index
    %40 = vector.load %arg6[%c6, %c0_21] : memref<32x256xf32, #tpu.memory_space<vmem>>, vector<1x256xf32>
    %41 = vector.broadcast %40 : vector<1x256xf32> to vector<8x256xf32>
    %42 = arith.mulf %39, %41 : vector<8x256xf32>
    %c48 = arith.constant 48 : index
    %c0_22 = arith.constant 0 : index
    %43 = vector.load %arg8[%c48, %c0_22] : memref<224x256xf32, #tpu.memory_space<vmem>>, vector<8x256xf32>
    tpu.vector_store %arg8[%c48, %c0_22], %42 {strides = array<i32>} : memref<224x256xf32, #tpu.memory_space<vmem>>, vector<8x256xf32>,
    %c56_i32 = arith.constant 56 : i32
    %44 = tpu.dynamic_rotate %8 by %c56_i32 dim 1 : vector<8x256xf32>, i32 -> vector<8x256xf32>
    %c7 = arith.constant 7 : index
    %c0_23 = arith.constant 0 : index
    %45 = vector.load %arg6[%c7, %c0_23] : memref<32x256xf32, #tpu.memory_space<vmem>>, vector<1x256xf32>
    %46 = vector.broadcast %45 : vector<1x256xf32> to vector<8x256xf32>
    %47 = arith.mulf %44, %46 : vector<8x256xf32>
    %c56 = arith.constant 56 : index
    %c0_24 = arith.constant 0 : index
    %48 = vector.load %arg8[%c56, %c0_24] : memref<224x256xf32, #tpu.memory_space<vmem>>, vector<8x256xf32>
    tpu.vector_store %arg8[%c56, %c0_24], %47 {strides = array<i32>} : memref<224x256xf32, #tpu.memory_space<vmem>>, vector<8x256xf32>,
    %c55_i32 = arith.constant 55 : i32
    %49 = tpu.dynamic_rotate %8 by %c55_i32 dim 1 : vector<8x256xf32>, i32 -> vector<8x256xf32>
    %c8_25 = arith.constant 8 : index
    %c0_26 = arith.constant 0 : index
    %50 = vector.load %arg6[%c8_25, %c0_26] : memref<32x256xf32, #tpu.memory_space<vmem>>, vector<1x256xf32>
    %51 = vector.broadcast %50 : vector<1x256xf32> to vector<8x256xf32>
    %52 = arith.mulf %49, %51 : vector<8x256xf32>
    %c64 = arith.constant 64 : index
    %c0_27 = arith.constant 0 : index
    %53 = vector.load %arg8[%c64, %c0_27] : memref<224x256xf32, #tpu.memory_space<vmem>>, vector<8x256xf32>
    tpu.vector_store %arg8[%c64, %c0_27], %52 {strides = array<i32>} : memref<224x256xf32, #tpu.memory_space<vmem>>, vector<8x256xf32>,
    %c9_i32 = arith.constant 9 : i32
    %54 = tpu.dynamic_rotate %8 by %c9_i32 dim 1 : vector<8x256xf32>, i32 -> vector<8x256xf32>
    %c9 = arith.constant 9 : index
    %c0_28 = arith.constant 0 : index
    %55 = vector.load %arg6[%c9, %c0_28] : memref<32x256xf32, #tpu.memory_space<vmem>>, vector<1x256xf32>
    %56 = vector.broadcast %55 : vector<1x256xf32> to vector<8x256xf32>
    %57 = arith.mulf %54, %56 : vector<8x256xf32>
    %c72 = arith.constant 72 : index
    %c0_29 = arith.constant 0 : index
    %58 = vector.load %arg8[%c72, %c0_29] : memref<224x256xf32, #tpu.memory_space<vmem>>, vector<8x256xf32>
    tpu.vector_store %arg8[%c72, %c0_29], %57 {strides = array<i32>} : memref<224x256xf32, #tpu.memory_space<vmem>>, vector<8x256xf32>,
    %c8_i32 = arith.constant 8 : i32
    %59 = tpu.dynamic_rotate %8 by %c8_i32 dim 1 : vector<8x256xf32>, i32 -> vector<8x256xf32>
    %c10 = arith.constant 10 : index
    %c0_30 = arith.constant 0 : index
    %60 = vector.load %arg6[%c10, %c0_30] : memref<32x256xf32, #tpu.memory_space<vmem>>, vector<1x256xf32>
    %61 = vector.broadcast %60 : vector<1x256xf32> to vector<8x256xf32>
    %62 = arith.mulf %59, %61 : vector<8x256xf32>
    %c80 = arith.constant 80 : index
    %c0_31 = arith.constant 0 : index
    %63 = vector.load %arg8[%c80, %c0_31] : memref<224x256xf32, #tpu.memory_space<vmem>>, vector<8x256xf32>
    tpu.vector_store %arg8[%c80, %c0_31], %62 {strides = array<i32>} : memref<224x256xf32, #tpu.memory_space<vmem>>, vector<8x256xf32>,
    %c7_i32 = arith.constant 7 : i32
    %64 = tpu.dynamic_rotate %8 by %c7_i32 dim 1 : vector<8x256xf32>, i32 -> vector<8x256xf32>
    %c11 = arith.constant 11 : index
    %c0_32 = arith.constant 0 : index
    %65 = vector.load %arg6[%c11, %c0_32] : memref<32x256xf32, #tpu.memory_space<vmem>>, vector<1x256xf32>
    %66 = vector.broadcast %65 : vector<1x256xf32> to vector<8x256xf32>
    %67 = arith.mulf %64, %66 : vector<8x256xf32>
    %c88 = arith.constant 88 : index
    %c0_33 = arith.constant 0 : index
    %68 = vector.load %arg8[%c88, %c0_33] : memref<224x256xf32, #tpu.memory_space<vmem>>, vector<8x256xf32>
    tpu.vector_store %arg8[%c88, %c0_33], %67 {strides = array<i32>} : memref<224x256xf32, #tpu.memory_space<vmem>>, vector<8x256xf32>,
    %c1_i32 = arith.constant 1 : i32
    %69 = tpu.dynamic_rotate %8 by %c1_i32 dim 1 : vector<8x256xf32>, i32 -> vector<8x256xf32>
    %c12 = arith.constant 12 : index
    %c0_34 = arith.constant 0 : index
    %70 = vector.load %arg6[%c12, %c0_34] : memref<32x256xf32, #tpu.memory_space<vmem>>, vector<1x256xf32>
    %71 = vector.broadcast %70 : vector<1x256xf32> to vector<8x256xf32>
    %72 = arith.mulf %69, %71 : vector<8x256xf32>
    %c96 = arith.constant 96 : index
    %c0_35 = arith.constant 0 : index
    %73 = vector.load %arg8[%c96, %c0_35] : memref<224x256xf32, #tpu.memory_space<vmem>>, vector<8x256xf32>
    tpu.vector_store %arg8[%c96, %c0_35], %72 {strides = array<i32>} : memref<224x256xf32, #tpu.memory_space<vmem>>, vector<8x256xf32>,
    %c13 = arith.constant 13 : index
    %c0_36 = arith.constant 0 : index
    %74 = vector.load %arg6[%c13, %c0_36] : memref<32x256xf32, #tpu.memory_space<vmem>>, vector<1x256xf32>
    %75 = vector.broadcast %74 : vector<1x256xf32> to vector<8x256xf32>
    %76 = arith.mulf %8, %75 : vector<8x256xf32>
    %c104 = arith.constant 104 : index
    %c0_37 = arith.constant 0 : index
    %77 = vector.load %arg8[%c104, %c0_37] : memref<224x256xf32, #tpu.memory_space<vmem>>, vector<8x256xf32>
    tpu.vector_store %arg8[%c104, %c0_37], %76 {strides = array<i32>} : memref<224x256xf32, #tpu.memory_space<vmem>>, vector<8x256xf32>,
    %c255_i32 = arith.constant 255 : i32
    %78 = tpu.dynamic_rotate %8 by %c255_i32 dim 1 : vector<8x256xf32>, i32 -> vector<8x256xf32>
    %c14 = arith.constant 14 : index
    %c0_38 = arith.constant 0 : index
    %79 = vector.load %arg6[%c14, %c0_38] : memref<32x256xf32, #tpu.memory_space<vmem>>, vector<1x256xf32>
    %80 = vector.broadcast %79 : vector<1x256xf32> to vector<8x256xf32>
    %81 = arith.mulf %78, %80 : vector<8x256xf32>
    %c112 = arith.constant 112 : index
    %c0_39 = arith.constant 0 : index
    %82 = vector.load %arg8[%c112, %c0_39] : memref<224x256xf32, #tpu.memory_space<vmem>>, vector<8x256xf32>
    tpu.vector_store %arg8[%c112, %c0_39], %81 {strides = array<i32>} : memref<224x256xf32, #tpu.memory_space<vmem>>, vector<8x256xf32>,
    %c249_i32 = arith.constant 249 : i32
    %83 = tpu.dynamic_rotate %8 by %c249_i32 dim 1 : vector<8x256xf32>, i32 -> vector<8x256xf32>
    %c15 = arith.constant 15 : index
    %c0_40 = arith.constant 0 : index
    %84 = vector.load %arg6[%c15, %c0_40] : memref<32x256xf32, #tpu.memory_space<vmem>>, vector<1x256xf32>
    %85 = vector.broadcast %84 : vector<1x256xf32> to vector<8x256xf32>
    %86 = arith.mulf %83, %85 : vector<8x256xf32>
    %c120 = arith.constant 120 : index
    %c0_41 = arith.constant 0 : index
    %87 = vector.load %arg8[%c120, %c0_41] : memref<224x256xf32, #tpu.memory_space<vmem>>, vector<8x256xf32>
    tpu.vector_store %arg8[%c120, %c0_41], %86 {strides = array<i32>} : memref<224x256xf32, #tpu.memory_space<vmem>>, vector<8x256xf32>,
    %c248_i32 = arith.constant 248 : i32
    %88 = tpu.dynamic_rotate %8 by %c248_i32 dim 1 : vector<8x256xf32>, i32 -> vector<8x256xf32>
    %c16_42 = arith.constant 16 : index
    %c0_43 = arith.constant 0 : index
    %89 = vector.load %arg6[%c16_42, %c0_43] : memref<32x256xf32, #tpu.memory_space<vmem>>, vector<1x256xf32>
    %90 = vector.broadcast %89 : vector<1x256xf32> to vector<8x256xf32>
    %91 = arith.mulf %88, %90 : vector<8x256xf32>
    %c128 = arith.constant 128 : index
    %c0_44 = arith.constant 0 : index
    %92 = vector.load %arg8[%c128, %c0_44] : memref<224x256xf32, #tpu.memory_space<vmem>>, vector<8x256xf32>
    tpu.vector_store %arg8[%c128, %c0_44], %91 {strides = array<i32>} : memref<224x256xf32, #tpu.memory_space<vmem>>, vector<8x256xf32>,
    %c247_i32 = arith.constant 247 : i32
    %93 = tpu.dynamic_rotate %8 by %c247_i32 dim 1 : vector<8x256xf32>, i32 -> vector<8x256xf32>
    %c17 = arith.constant 17 : index
    %c0_45 = arith.constant 0 : index
    %94 = vector.load %arg6[%c17, %c0_45] : memref<32x256xf32, #tpu.memory_space<vmem>>, vector<1x256xf32>
    %95 = vector.broadcast %94 : vector<1x256xf32> to vector<8x256xf32>
    %96 = arith.mulf %93, %95 : vector<8x256xf32>
    %c136 = arith.constant 136 : index
    %c0_46 = arith.constant 0 : index
    %97 = vector.load %arg8[%c136, %c0_46] : memref<224x256xf32, #tpu.memory_space<vmem>>, vector<8x256xf32>
    tpu.vector_store %arg8[%c136, %c0_46], %96 {strides = array<i32>} : memref<224x256xf32, #tpu.memory_space<vmem>>, vector<8x256xf32>,
    %c201_i32 = arith.constant 201 : i32
    %98 = tpu.dynamic_rotate %8 by %c201_i32 dim 1 : vector<8x256xf32>, i32 -> vector<8x256xf32>
    %c18 = arith.constant 18 : index
    %c0_47 = arith.constant 0 : index
    %99 = vector.load %arg6[%c18, %c0_47] : memref<32x256xf32, #tpu.memory_space<vmem>>, vector<1x256xf32>
    %100 = vector.broadcast %99 : vector<1x256xf32> to vector<8x256xf32>
    %101 = arith.mulf %98, %100 : vector<8x256xf32>
    %c144 = arith.constant 144 : index
    %c0_48 = arith.constant 0 : index
    %102 = vector.load %arg8[%c144, %c0_48] : memref<224x256xf32, #tpu.memory_space<vmem>>, vector<8x256xf32>
    tpu.vector_store %arg8[%c144, %c0_48], %101 {strides = array<i32>} : memref<224x256xf32, #tpu.memory_space<vmem>>, vector<8x256xf32>,
    %c200_i32 = arith.constant 200 : i32
    %103 = tpu.dynamic_rotate %8 by %c200_i32 dim 1 : vector<8x256xf32>, i32 -> vector<8x256xf32>
    %c19 = arith.constant 19 : index
    %c0_49 = arith.constant 0 : index
    %104 = vector.load %arg6[%c19, %c0_49] : memref<32x256xf32, #tpu.memory_space<vmem>>, vector<1x256xf32>
    %105 = vector.broadcast %104 : vector<1x256xf32> to vector<8x256xf32>
    %106 = arith.mulf %103, %105 : vector<8x256xf32>
    %c152 = arith.constant 152 : index
    %c0_50 = arith.constant 0 : index
    %107 = vector.load %arg8[%c152, %c0_50] : memref<224x256xf32, #tpu.memory_space<vmem>>, vector<8x256xf32>
    tpu.vector_store %arg8[%c152, %c0_50], %106 {strides = array<i32>} : memref<224x256xf32, #tpu.memory_space<vmem>>, vector<8x256xf32>,
    %c199_i32 = arith.constant 199 : i32
    %108 = tpu.dynamic_rotate %8 by %c199_i32 dim 1 : vector<8x256xf32>, i32 -> vector<8x256xf32>
    %c20 = arith.constant 20 : index
    %c0_51 = arith.constant 0 : index
    %109 = vector.load %arg6[%c20, %c0_51] : memref<32x256xf32, #tpu.memory_space<vmem>>, vector<1x256xf32>
    %110 = vector.broadcast %109 : vector<1x256xf32> to vector<8x256xf32>
    %111 = arith.mulf %108, %110 : vector<8x256xf32>
    %c160 = arith.constant 160 : index
    %c0_52 = arith.constant 0 : index
    %112 = vector.load %arg8[%c160, %c0_52] : memref<224x256xf32, #tpu.memory_space<vmem>>, vector<8x256xf32>
    tpu.vector_store %arg8[%c160, %c0_52], %111 {strides = array<i32>} : memref<224x256xf32, #tpu.memory_space<vmem>>, vector<8x256xf32>,
    %c193_i32 = arith.constant 193 : i32
    %113 = tpu.dynamic_rotate %8 by %c193_i32 dim 1 : vector<8x256xf32>, i32 -> vector<8x256xf32>
    %c21 = arith.constant 21 : index
    %c0_53 = arith.constant 0 : index
    %114 = vector.load %arg6[%c21, %c0_53] : memref<32x256xf32, #tpu.memory_space<vmem>>, vector<1x256xf32>
    %115 = vector.broadcast %114 : vector<1x256xf32> to vector<8x256xf32>
    %116 = arith.mulf %113, %115 : vector<8x256xf32>
    %c168 = arith.constant 168 : index
    %c0_54 = arith.constant 0 : index
    %117 = vector.load %arg8[%c168, %c0_54] : memref<224x256xf32, #tpu.memory_space<vmem>>, vector<8x256xf32>
    tpu.vector_store %arg8[%c168, %c0_54], %116 {strides = array<i32>} : memref<224x256xf32, #tpu.memory_space<vmem>>, vector<8x256xf32>,
    %c192_i32 = arith.constant 192 : i32
    %118 = tpu.dynamic_rotate %8 by %c192_i32 dim 1 : vector<8x256xf32>, i32 -> vector<8x256xf32>
    %c22 = arith.constant 22 : index
    %c0_55 = arith.constant 0 : index
    %119 = vector.load %arg6[%c22, %c0_55] : memref<32x256xf32, #tpu.memory_space<vmem>>, vector<1x256xf32>
    %120 = vector.broadcast %119 : vector<1x256xf32> to vector<8x256xf32>
    %121 = arith.mulf %118, %120 : vector<8x256xf32>
    %c176 = arith.constant 176 : index
    %c0_56 = arith.constant 0 : index
    %122 = vector.load %arg8[%c176, %c0_56] : memref<224x256xf32, #tpu.memory_space<vmem>>, vector<8x256xf32>
    tpu.vector_store %arg8[%c176, %c0_56], %121 {strides = array<i32>} : memref<224x256xf32, #tpu.memory_space<vmem>>, vector<8x256xf32>,
    %c191_i32 = arith.constant 191 : i32
    %123 = tpu.dynamic_rotate %8 by %c191_i32 dim 1 : vector<8x256xf32>, i32 -> vector<8x256xf32>
    %c23 = arith.constant 23 : index
    %c0_57 = arith.constant 0 : index
    %124 = vector.load %arg6[%c23, %c0_57] : memref<32x256xf32, #tpu.memory_space<vmem>>, vector<1x256xf32>
    %125 = vector.broadcast %124 : vector<1x256xf32> to vector<8x256xf32>
    %126 = arith.mulf %123, %125 : vector<8x256xf32>
    %c184 = arith.constant 184 : index
    %c0_58 = arith.constant 0 : index
    %127 = vector.load %arg8[%c184, %c0_58] : memref<224x256xf32, #tpu.memory_space<vmem>>, vector<8x256xf32>
    tpu.vector_store %arg8[%c184, %c0_58], %126 {strides = array<i32>} : memref<224x256xf32, #tpu.memory_space<vmem>>, vector<8x256xf32>,
    %c185_i32 = arith.constant 185 : i32
    %128 = tpu.dynamic_rotate %8 by %c185_i32 dim 1 : vector<8x256xf32>, i32 -> vector<8x256xf32>
    %c24_59 = arith.constant 24 : index
    %c0_60 = arith.constant 0 : index
    %129 = vector.load %arg6[%c24_59, %c0_60] : memref<32x256xf32, #tpu.memory_space<vmem>>, vector<1x256xf32>
    %130 = vector.broadcast %129 : vector<1x256xf32> to vector<8x256xf32>
    %131 = arith.mulf %128, %130 : vector<8x256xf32>
    %c192 = arith.constant 192 : index
    %c0_61 = arith.constant 0 : index
    %132 = vector.load %arg8[%c192, %c0_61] : memref<224x256xf32, #tpu.memory_space<vmem>>, vector<8x256xf32>
    tpu.vector_store %arg8[%c192, %c0_61], %131 {strides = array<i32>} : memref<224x256xf32, #tpu.memory_space<vmem>>, vector<8x256xf32>,
    %c184_i32 = arith.constant 184 : i32
    %133 = tpu.dynamic_rotate %8 by %c184_i32 dim 1 : vector<8x256xf32>, i32 -> vector<8x256xf32>
    %c25 = arith.constant 25 : index
    %c0_62 = arith.constant 0 : index
    %134 = vector.load %arg6[%c25, %c0_62] : memref<32x256xf32, #tpu.memory_space<vmem>>, vector<1x256xf32>
    %135 = vector.broadcast %134 : vector<1x256xf32> to vector<8x256xf32>
    %136 = arith.mulf %133, %135 : vector<8x256xf32>
    %c200 = arith.constant 200 : index
    %c0_63 = arith.constant 0 : index
    %137 = vector.load %arg8[%c200, %c0_63] : memref<224x256xf32, #tpu.memory_space<vmem>>, vector<8x256xf32>
    tpu.vector_store %arg8[%c200, %c0_63], %136 {strides = array<i32>} : memref<224x256xf32, #tpu.memory_space<vmem>>, vector<8x256xf32>,
    %c183_i32 = arith.constant 183 : i32
    %138 = tpu.dynamic_rotate %8 by %c183_i32 dim 1 : vector<8x256xf32>, i32 -> vector<8x256xf32>
    %c26 = arith.constant 26 : index
    %c0_64 = arith.constant 0 : index
    %139 = vector.load %arg6[%c26, %c0_64] : memref<32x256xf32, #tpu.memory_space<vmem>>, vector<1x256xf32>
    %140 = vector.broadcast %139 : vector<1x256xf32> to vector<8x256xf32>
    %141 = arith.mulf %138, %140 : vector<8x256xf32>
    %c208 = arith.constant 208 : index
    %c0_65 = arith.constant 0 : index
    %142 = vector.load %arg8[%c208, %c0_65] : memref<224x256xf32, #tpu.memory_space<vmem>>, vector<8x256xf32>
    tpu.vector_store %arg8[%c208, %c0_65], %141 {strides = array<i32>} : memref<224x256xf32, #tpu.memory_space<vmem>>, vector<8x256xf32>,
    %c0_66 = arith.constant 0 : index
    %c0_67 = arith.constant 0 : index
    %c0_68 = arith.constant 0 : index
    %143 = vector.load %arg2[%c0_66, %c0_67, %c0_68] : memref<1x8x256xf32, #tpu.memory_space<vmem>>, vector<1x8x256xf32>
    %144 = vector.shape_cast %143 : vector<1x8x256xf32> to vector<8x256xf32>
    %c216 = arith.constant 216 : index
    %c0_69 = arith.constant 0 : index
    %145 = vector.load %arg8[%c216, %c0_69] : memref<224x256xf32, #tpu.memory_space<vmem>>, vector<8x256xf32>
    tpu.vector_store %arg8[%c216, %c0_69], %144 {strides = array<i32>} : memref<224x256xf32, #tpu.memory_space<vmem>>, vector<8x256xf32>,
    %c0_70 = arith.constant 0 : index
    %c0_71 = arith.constant 0 : index
    %146 = vector.load %arg4[%c0_70, %c0_71] : memref<8x224xf32, #tpu.memory_space<vmem>>, vector<8x224xf32>
    %c0_72 = arith.constant 0 : index
    %c0_73 = arith.constant 0 : index
    %147 = vector.load %arg8[%c0_72, %c0_73] : memref<224x256xf32, #tpu.memory_space<vmem>>, vector<224x256xf32>
    %cst_74 = arith.constant dense<0.000000e+00> : vector<8x256xf32>
    %148 = tpu.matmul %146, %147, %cst_74 {dimension_numbers = #tpu.dot_dimension_numbers<[1], [0], [0], [1], [0, 0, 1, 1], [], []>} : vector<8x224xf32>, vector<224x256xf32>, vector<8x256xf32> -> vector<8x256xf32>
    %c0_75 = arith.constant 0 : index
    %c1_76 = arith.constant 1 : index
    %149 = vector.load %arg5[%c0_75, %c1_76] : memref<8x2xf32, #tpu.memory_space<vmem>>, vector<8x1xf32>
    %150 = vector.broadcast %149 : vector<8x1xf32> to vector<8x256xf32>
    %151 = arith.addf %148, %150 : vector<8x256xf32>
    %cst_77 = arith.constant 0.000000e+00 : f32
    %152 = vector.broadcast %cst_77 : f32 to vector<8x256xf32>
    %153 = arith.maximumf %151, %152 : vector<8x256xf32>
    %c0_78 = arith.constant 0 : index
    %c0_79 = arith.constant 0 : index
    %c0_80 = arith.constant 0 : index
    %154 = vector.load %arg7[%c0_78, %c0_79, %c0_80] : memref<1x8x256xf32, #tpu.memory_space<vmem>>, vector<1x8x256xf32>
    %155 = vector.shape_cast %154 : vector<1x8x256xf32> to vector<8x256xf32>
    %156 = vector.shape_cast %153 : vector<8x256xf32> to vector<1x8x256xf32>
    tpu.vector_store %arg7[%c0_78, %c0_79, %c0_80], %156 {strides = array<i32>} : memref<1x8x256xf32, #tpu.memory_space<vmem>>, vector<1x8x256xf32>,
    return
  }
  func.func @transform_0(%arg0: i32) -> (i32, i32, i32) {
    %c0_i32 = arith.constant 0 : i32
    %c0_i32_0 = arith.constant 0 : i32
    %c0_i32_1 = arith.constant 0 : i32
    return %arg0, %c0_i32, %c0_i32_0 : i32, i32, i32
  }
  func.func @transform_1(%arg0: i32) -> (i32, i32, i32) {
    %c0_i32 = arith.constant 0 : i32
    %c0_i32_0 = arith.constant 0 : i32
    %c0_i32_1 = arith.constant 0 : i32
    return %arg0, %c0_i32, %c0_i32_0 : i32, i32, i32
  }
  func.func @transform_2(%arg0: i32) -> (i32, i32) {
    %c0_i32 = arith.constant 0 : i32
    %c0_i32_0 = arith.constant 0 : i32
    %c0_i32_1 = arith.constant 0 : i32
    return %c0_i32, %c0_i32_0 : i32, i32
  }
  func.func @transform_3(%arg0: i32) -> (i32, i32) {
    %c0_i32 = arith.constant 0 : i32
    %c0_i32_0 = arith.constant 0 : i32
    %c0_i32_1 = arith.constant 0 : i32
    return %c0_i32, %c0_i32_0 : i32, i32
  }
  func.func @transform_4(%arg0: i32) -> (i32, i32) {
    %c0_i32 = arith.constant 0 : i32
    %c0_i32_0 = arith.constant 0 : i32
    %c0_i32_1 = arith.constant 0 : i32
    return %c0_i32, %c0_i32_0 : i32, i32
  }
  func.func @transform_5(%arg0: i32) -> (i32, i32) {
    %c0_i32 = arith.constant 0 : i32
    %c0_i32_0 = arith.constant 0 : i32
    %c0_i32_1 = arith.constant 0 : i32
    return %c0_i32, %c0_i32_0 : i32, i32
  }
  func.func @transform_6(%arg0: i32) -> (i32, i32, i32) {
    %c0_i32 = arith.constant 0 : i32
    %c0_i32_0 = arith.constant 0 : i32
    %c0_i32_1 = arith.constant 0 : i32
    return %arg0, %c0_i32, %c0_i32_0 : i32, i32, i32
  }
}

</mosaic_0001>

<llo_original>
// kernel: resblock_forward.1
$region0: #{resblock_forward.1}
  #allocation0 [shape = 'u32[]', space=smem, size = 0x4, offset = 0x4, fixed_abs, tag = 'smem constant byte address 0x4 - core index']
  #allocation1 [shape = 'u32[72,128]{1,0:T(1,128)}', space=vmem, size = 0x9000, scoped, tag = 'internal scratch']
  #allocation2 [shape = 'f32[224,256]{1,0:T(8,128)}', space=vmem, size = 0x38000, scoped, tag = 'scratch operand']
  %s0 = inlined_call_operand.vmem [shape: f32[2,112,256], index: 0, kind: input, shape index: {}]
  %s1 = inlined_call_operand.vmem [shape: f32[2,8,256], index: 1, kind: input, shape index: {}]
  %s2 = inlined_call_operand.vmem [shape: f32[8,112], index: 2, kind: input, shape index: {}]
  %s3 = inlined_call_operand.vmem [shape: f32[8,224], index: 3, kind: input, shape index: {}]
  %s4 = inlined_call_operand.vmem [shape: f32[8,2], index: 4, kind: input, shape index: {}]
  %s5 = inlined_call_operand.vmem [shape: f32[32,256], index: 5, kind: input, shape index: {}]
  %s6 = inlined_call_operand.vmem [shape: f32[2,8,256], index: 6, kind: output, shape index: {}]
  %s7 = sld [smem:[#allocation0]]
  $region57: #{resblock_forward.1} parent=0
    _
  %s9 = ssub.s32 1, %s7
  %s10 = scalar_select 0, %s9, %s7
  loop: start=0, step=1, limit=4
  $region2: #{resblock_forward.1} parent=0 // loop_pre_header
    _
  $region3: #{resblock_forward.1} parent=0 // loop_header
    %s12 = sphi 0, %s16
    %p13 = scmp.ge.s32.totalorder %s12, 4
    %s22 = sphi 0, %s24
    %s25 = sphi 0, %s22
    %s26 = sphi 0, %s25
    %s42 = sphi 0, %s26
    %s48 = sphi 0, %s50
    %s51 = sphi 0, %s48
    %s52 = sphi 0, %s51
    %s68 = sphi 0, %s52
    %s72 = sphi 0, %s72
    %s74 = sphi 0, %s72
    %s75 = sphi 0, %s74
    %s89 = sphi 0, %s75
    %s93 = sphi 0, %s93
    %s95 = sphi 0, %s93
    %s96 = sphi 0, %s95
    %s110 = sphi 0, %s96
    %s114 = sphi 0, %s114
    %s116 = sphi 0, %s114
    %s117 = sphi 0, %s116
    %s131 = sphi 0, %s117
    %s135 = sphi 0, %s135
    %s137 = sphi 0, %s135
    %s138 = sphi 0, %s137
    %s152 = sphi 0, %s138
    %s158 = sphi 0, %s160
    %s161 = sphi 0, %s158
    %s162 = sphi 0, %s161
    %s178 = sphi 0, %s162
  $region4: #{resblock_forward.1} parent=0 // loop_header_branch
    %15 = sbr.rel (%p13) target = $region8
  $region5: #{resblock_forward.1} parent=0 // loop_body
    %s17 = ssub.s32 %s12, 1
    %s18 = ssub.s32 %s12, 2
    %s19 = sadd.s32 %s12, 1
    %s20 = ssub.s32 %s12, %s19
    %p21 = scmp.eq.s32.totalorder %s20, 0
    %s23 = sadd.s32 %s22, 1
    %s24 = scalar_select %p21, %s22, %s23
    %p27 = pneg %p21
    %p28 = scmp.eq.s32.totalorder %s12, 1
    %p29 = por %p27, %p28
    %p30 = scmp.ne.s32.totalorder %s22, %s25
    %p31 = scmp.eq.s32.totalorder %s12, 0
    %p32 = por %p30, %p31
    %p33 = scmp.ne.s32.totalorder %s22, %s25
    %p34 = scmp.eq.s32.totalorder %s17, 1
    %p35 = por %p33, %p34
    %p36 = scmp.ne.s32.totalorder %s25, %s26
    %p37 = scmp.eq.s32.totalorder %s17, 0
    %p38 = por %p36, %p37
    %p39 = scmp.ne.s32.totalorder %s25, %s26
    %p40 = scmp.eq.s32.totalorder %s18, 1
    %p41 = por %p39, %p40
    %p43 = scmp.ne.s32.totalorder %s26, %s42
    %p44 = scmp.eq.s32.totalorder %s18, 0
    %p45 = por %p43, %p44
    %s46 = ssub.s32 %s12, %s19
    %p47 = scmp.eq.s32.totalorder %s46, 0
    %s49 = sadd.s32 %s48, 1
    %s50 = scalar_select %p47, %s48, %s49
    %p53 = pneg %p47
    %p54 = scmp.eq.s32.totalorder %s12, 1
    %p55 = por %p53, %p54
    %p56 = scmp.ne.s32.totalorder %s48, %s51
    %p57 = scmp.eq.s32.totalorder %s12, 0
    %p58 = por %p56, %p57
    %p59 = scmp.ne.s32.totalorder %s48, %s51
    %p60 = scmp.eq.s32.totalorder %s17, 1
    %p61 = por %p59, %p60
    %p62 = scmp.ne.s32.totalorder %s51, %s52
    %p63 = scmp.eq.s32.totalorder %s17, 0
    %p64 = por %p62, %p63
    %p65 = scmp.ne.s32.totalorder %s51, %s52
    %p66 = scmp.eq.s32.totalorder %s18, 1
    %p67 = por %p65, %p66
    %p69 = scmp.ne.s32.totalorder %s52, %s68
    %p70 = scmp.eq.s32.totalorder %s18, 0
    %p71 = por %p69, %p70
    %s73 = sadd.s32 %s72, 1
    %p76 = scmp.eq.s32.totalorder %s12, 1
    %p77 = scmp.ne.s32.totalorder %s72, %s74
    %p78 = scmp.eq.s32.totalorder %s12, 0
    %p79 = por %p77, %p78
    %p80 = scmp.ne.s32.totalorder %s72, %s74
    %p81 = scmp.eq.s32.totalorder %s17, 1
    %p82 = por %p80, %p81
    %p83 = scmp.ne.s32.totalorder %s74, %s75
    %p84 = scmp.eq.s32.totalorder %s17, 0
    %p85 = por %p83, %p84
    %p86 = scmp.ne.s32.totalorder %s74, %s75
    %p87 = scmp.eq.s32.totalorder %s18, 1
    %p88 = por %p86, %p87
    %p90 = scmp.ne.s32.totalorder %s75, %s89
    %p91 = scmp.eq.s32.totalorder %s18, 0
    %p92 = por %p90, %p91
    %s94 = sadd.s32 %s93, 1
    %p97 = scmp.eq.s32.totalorder %s12, 1
    %p98 = scmp.ne.s32.totalorder %s93, %s95
    %p99 = scmp.eq.s32.totalorder %s12, 0
    %p100 = por %p98, %p99
    %p101 = scmp.ne.s32.totalorder %s93, %s95
    %p102 = scmp.eq.s32.totalorder %s17, 1
    %p103 = por %p101, %p102
    %p104 = scmp.ne.s32.totalorder %s95, %s96
    %p105 = scmp.eq.s32.totalorder %s17, 0
    %p106 = por %p104, %p105
    %p107 = scmp.ne.s32.totalorder %s95, %s96
    %p108 = scmp.eq.s32.totalorder %s18, 1
    %p109 = por %p107, %p108
    %p111 = scmp.ne.s32.totalorder %s96, %s110
    %p112 = scmp.eq.s32.totalorder %s18, 0
    %p113 = por %p111, %p112
    %s115 = sadd.s32 %s114, 1
    %p118 = scmp.eq.s32.totalorder %s12, 1
    %p119 = scmp.ne.s32.totalorder %s114, %s116
    %p120 = scmp.eq.s32.totalorder %s12, 0
    %p121 = por %p119, %p120
    %p122 = scmp.ne.s32.totalorder %s114, %s116
    %p123 = scmp.eq.s32.totalorder %s17, 1
    %p124 = por %p122, %p123
    %p125 = scmp.ne.s32.totalorder %s116, %s117
    %p126 = scmp.eq.s32.totalorder %s17, 0
    %p127 = por %p125, %p126
    %p128 = scmp.ne.s32.totalorder %s116, %s117
    %p129 = scmp.eq.s32.totalorder %s18, 1
    %p130 = por %p128, %p129
    %p132 = scmp.ne.s32.totalorder %s117, %s131
    %p133 = scmp.eq.s32.totalorder %s18, 0
    %p134 = por %p132, %p133
    %s136 = sadd.s32 %s135, 1
    %p139 = scmp.eq.s32.totalorder %s12, 1
    %p140 = scmp.ne.s32.totalorder %s135, %s137
    %p141 = scmp.eq.s32.totalorder %s12, 0
    %p142 = por %p140, %p141
    %p143 = scmp.ne.s32.totalorder %s135, %s137
    %p144 = scmp.eq.s32.totalorder %s17, 1
    %p145 = por %p143, %p144
    %p146 = scmp.ne.s32.totalorder %s137, %s138
    %p147 = scmp.eq.s32.totalorder %s17, 0
    %p148 = por %p146, %p147
    %p149 = scmp.ne.s32.totalorder %s137, %s138
    %p150 = scmp.eq.s32.totalorder %s18, 1
    %p151 = por %p149, %p150
    %p153 = scmp.ne.s32.totalorder %s138, %s152
    %p154 = scmp.eq.s32.totalorder %s18, 0
    %p155 = por %p153, %p154
    %s156 = ssub.s32 %s12, %s19
    %p157 = scmp.eq.s32.totalorder %s156, 0
    %s159 = sadd.s32 %s158, 1
    %s160 = scalar_select %p157, %s158, %s159
    %p163 = pneg %p157
    %p164 = scmp.eq.s32.totalorder %s12, 1
    %p165 = por %p163, %p164
    %p166 = scmp.ne.s32.totalorder %s158, %s161
    %p167 = scmp.eq.s32.totalorder %s12, 0
    %p168 = por %p166, %p167
    %p169 = scmp.ne.s32.totalorder %s158, %s161
    %p170 = scmp.eq.s32.totalorder %s17, 1
    %p171 = por %p169, %p170
    %p172 = scmp.ne.s32.totalorder %s161, %s162
    %p173 = scmp.eq.s32.totalorder %s17, 0
    %p174 = por %p172, %p173
    %p175 = scmp.ne.s32.totalorder %s161, %s162
    %p176 = scmp.eq.s32.totalorder %s18, 1
    %p177 = por %p175, %p176
    %p179 = scmp.ne.s32.totalorder %s162, %s178
    %p180 = scmp.eq.s32.totalorder %s18, 0
    %p181 = por %p179, %p180
    %p182 = scmp.le.s32.totalorder 1, %s12
    %p183 = scmp.lt.s32.totalorder %s12, 3
    %p184 = pnand %p182, %p183
    %p185 = pneg %p184
    // Predicated region
    $region9: #{resblock_forward.1} parent=5 // pred_check
      _
    $region10: #{resblock_forward.1} parent=5 // pred_check_branch
      %187 = sbr.rel (%p184) target = $region12
    $region11: #{resblock_forward.1} parent=5 // pred_region
      %s188 = ssub.s32 %s12, 1
      // Predicated region
      $region13: #{resblock_forward.1} parent=11 // pred_check
        %p189 = pneg %p85
      $region14: #{resblock_forward.1} parent=11 // pred_check_branch
        %191 = sbr.rel (%p189) target = $region16
      $region15: #{resblock_forward.1} parent=11 // pred_region
        _
      $region16: #{resblock_forward.1} parent=11 // pred_fallthru
        _
      // Predicated region
      $region17: #{resblock_forward.1} parent=11 // pred_check
        %p192 = pneg %p106
      $region18: #{resblock_forward.1} parent=11 // pred_check_branch
        %194 = sbr.rel (%p192) target = $region20
      $region19: #{resblock_forward.1} parent=11 // pred_region
        _
      $region20: #{resblock_forward.1} parent=11 // pred_fallthru
        _
      // Predicated region
      $region21: #{resblock_forward.1} parent=11 // pred_check
        %p195 = pneg %p127
      $region22: #{resblock_forward.1} parent=11 // pred_check_branch
        %197 = sbr.rel (%p195) target = $region24
      $region23: #{resblock_forward.1} parent=11 // pred_region
        _
      $region24: #{resblock_forward.1} parent=11 // pred_fallthru
        _
      // Predicated region
      $region25: #{resblock_forward.1} parent=11 // pred_check
        %p198 = pneg %p148
      $region26: #{resblock_forward.1} parent=11 // pred_check_branch
        %200 = sbr.rel (%p198) target = $region28
      $region27: #{resblock_forward.1} parent=11 // pred_region
        _
      $region28: #{resblock_forward.1} parent=11 // pred_fallthru
        _
    $region12: #{resblock_forward.1} parent=5 // pred_fallthru
      _
    %p201 = scmp.lt.s32.totalorder %s12, 2
    // Predicated region
    $region29: #{resblock_forward.1} parent=5 // pred_check
      %p202 = pneg %p201
    $region30: #{resblock_forward.1} parent=5 // pred_check_branch
      %204 = sbr.rel (%p202) target = $region32
    $region31: #{resblock_forward.1} parent=5 // pred_region
      // Predicated region
      $region33: #{resblock_forward.1} parent=31 // pred_check
        %p205 = pneg %p32
      $region34: #{resblock_forward.1} parent=31 // pred_check_branch
        %207 = sbr.rel (%p205) target = $region36
      $region35: #{resblock_forward.1} parent=31 // pred_region
        %p208 = scmp.lt.s32.totalorder %s12, 1
        %s209 = scalar_select %p208, %s12, 1
        %s210 = smul.addr %s209, 28
        %s211 = smul.addr %s210, 8
        %s212 = scalar_lea.vmem %s0, %s211
      $region36: #{resblock_forward.1} parent=31 // pred_fallthru
        _
      // Predicated region
      $region37: #{resblock_forward.1} parent=31 // pred_check
        %p213 = pneg %p58
      $region38: #{resblock_forward.1} parent=31 // pred_check_branch
        %215 = sbr.rel (%p213) target = $region40
      $region39: #{resblock_forward.1} parent=31 // pred_region
        %p216 = scmp.lt.s32.totalorder %s12, 1
        %s217 = scalar_select %p216, %s12, 1
        %s218 = smul.addr %s217, 2
        %s219 = smul.addr %s218, 8
        %s220 = scalar_lea.vmem %s1, %s219
      $region40: #{resblock_forward.1} parent=31 // pred_fallthru
        _
    $region32: #{resblock_forward.1} parent=5 // pred_fallthru
      _
    %p221 = scmp.le.s32.totalorder 1, %s12
    %p222 = scmp.lt.s32.totalorder %s12, 3
    %p223 = pnand %p221, %p222
    %p224 = pneg %p223
    // Predicated region
    $region41: #{resblock_forward.1} parent=5 // pred_check
      _
    $region42: #{resblock_forward.1} parent=5 // pred_check_branch
      %226 = sbr.rel (%p223) target = $region44
    $region43: #{resblock_forward.1} parent=5 // pred_region
      %s227 = ssub.s32 %s12, 1
      %p228 = scmp.lt.s32.totalorder %s17, 1
      %s229 = scalar_select %p228, %s17, 1
      %s230 = smul.addr %s229, 28
      %s231 = smul.addr %s230, 8
      %s232 = scalar_lea.vmem %s0, %s231
      %p233 = pneg %p38
      %p234 = pneg %p35
      %p235 = scmp.lt.s32.totalorder %s17, 1
      %s236 = scalar_select %p235, %s17, 1
      %s237 = smul.addr %s236, 2
      %s238 = smul.addr %s237, 8
      %s239 = scalar_lea.vmem %s1, %s238
      %p240 = pneg %p64
      %p241 = pneg %p61
      %p242 = pneg %p85
      %p243 = pneg %p82
      %p244 = pneg %p106
      %p245 = pneg %p103
      %p246 = pneg %p127
      %p247 = pneg %p124
      %p248 = pneg %p148
      %p249 = pneg %p145
      %p250 = pneg %p174
      %p251 = pneg %p171
      %p252 = scmp.lt.s32.totalorder %s17, 1
      %s253 = scalar_select %p252, %s17, 1
      %s254 = smul.addr %s253, 2
      %s255 = smul.addr %s254, 8
      %s256 = scalar_lea.vmem %s6, %s255
      %p257 = scmp.lt.s32.totalorder %s17, 1
      %s258 = scalar_select %p257, %s17, 1
      %s259 = smul.addr %s258, 28
      %s260 = smul.addr %s259, 8
      %s261 = scalar_lea.vmem %s0, %s260
      %p262 = scmp.lt.s32.totalorder %s17, 1
      %s263 = scalar_select %p262, %s17, 1
      %s264 = smul.addr %s263, 2
      %s265 = smul.addr %s264, 8
      %s266 = scalar_lea.vmem %s1, %s265
      %p267 = scmp.lt.s32.totalorder %s17, 1
      %s268 = scalar_select %p267, %s17, 1
      %s269 = smul.addr %s268, 2
      %s270 = smul.addr %s269, 8
      %s271 = scalar_lea.vmem %s6, %s270
      %v272 = vld [vmem:[%s2] sm:$0xff]
      %v273 = vld [vmem:[%s261] sm:$0xff]
      %v274 = vld [vmem:[%s261 + $0x8] sm:$0xff]
      %v275 = vld [vmem:[%s261 + $0x10] sm:$0xff]
      %v276 = vld [vmem:[%s261 + $0x18] sm:$0xff]
      %v277 = vld [vmem:[%s261 + $0x20] sm:$0xff]
      %v278 = vld [vmem:[%s261 + $0x28] sm:$0xff]
      %v279 = vld [vmem:[%s261 + $0x30] sm:$0xff]
      %v280 = vld [vmem:[%s261 + $0x38] sm:$0xff]
      %v281 = vld [vmem:[%s261 + $0x40] sm:$0xff]
      %v282 = vld [vmem:[%s261 + $0x48] sm:$0xff]
      %v283 = vld [vmem:[%s261 + $0x50] sm:$0xff]
      %v284 = vld [vmem:[%s261 + $0x58] sm:$0xff]
      %v285 = vld [vmem:[%s261 + $0x60] sm:$0xff]
      %v286 = vld [vmem:[%s261 + $0x68] sm:$0xff]
      %v287 = vld [vmem:[%s261 + $0x70] sm:$0xff]
      %v288 = vld [vmem:[%s261 + $0x78] sm:$0xff]
      %v289 = vld [vmem:[%s261 + $0x80] sm:$0xff]
      %v290 = vld [vmem:[%s261 + $0x88] sm:$0xff]
      %v291 = vld [vmem:[%s261 + $0x90] sm:$0xff]
      %v292 = vld [vmem:[%s261 + $0x98] sm:$0xff]
      %v293 = vld [vmem:[%s261 + $0xa0] sm:$0xff]
      %v294 = vld [vmem:[%s261 + $0xa8] sm:$0xff]
      %v295 = vld [vmem:[%s261 + $0xb0] sm:$0xff]
      %v296 = vld [vmem:[%s261 + $0xb8] sm:$0xff]
      %v297 = vld [vmem:[%s261 + $0xc0] sm:$0xff]
      %v298 = vld [vmem:[%s261 + $0xc8] sm:$0xff]
      %v299 = vld [vmem:[%s261 + $0xd0] sm:$0xff]
      %v300 = vld [vmem:[%s261 + $0xd8] sm:$0xff]
      %v301 = vld [vmem:[%s4] sm:$0xff]
      %303 = vset.pattern.permute.xlu0 0
      %304 = vperm.xlu0 %303, %v301
      %v305 = vpop.permute.xlu0 %304
      %vm307 = vcmask 916480
      %v309 = vsel %vm307, %v272, 0
      %311 = vmatpush.msra.mxu0 0.0
      %312 = vmatpush.msra.mxu0 0.0
      %313 = vmatpush.msra.mxu0 %v299
      %314 = vmatpush.msra.mxu0 %v297
      %315 = vmatpush.msra.mxu0 %v295
      %316 = vmatpush.msra.mxu0 %v293
      %317 = vmatpush.msra.mxu0 %v291
      %318 = vmatpush.msra.mxu0 %v289
      %319 = vmatpush.msra.mxu0 %v287
      %320 = vmatpush.msra.mxu0 %v285
      %321 = vmatpush.msra.mxu0 %v283
      %322 = vmatpush.msra.mxu0 %v281
      %323 = vmatpush.msra.mxu0 %v279
      %324 = vmatpush.msra.mxu0 %v277
      %325 = vmatpush.msra.mxu0 %v275
      %326 = vmatpush.msra.mxu0 %v273
      %327 = vmatmul.f32.gmra.mxu0 %v309
      %v328 = vpop.f32.mrf.mxu0
      %v329 = vadd.f32 %v305, %v328
      %330 = vdwg.mxu0
      %331 = vmatpush.msra.mxu0 0.0
      %332 = vmatpush.msra.mxu0 0.0
      %333 = vmatpush.msra.mxu0 %v300
      %334 = vmatpush.msra.mxu0 %v298
      %335 = vmatpush.msra.mxu0 %v296
      %336 = vmatpush.msra.mxu0 %v294
      %337 = vmatpush.msra.mxu0 %v292
      %338 = vmatpush.msra.mxu0 %v290
      %339 = vmatpush.msra.mxu0 %v288
      %340 = vmatpush.msra.mxu0 %v286
      %341 = vmatpush.msra.mxu0 %v284
      %342 = vmatpush.msra.mxu0 %v282
      %343 = vmatpush.msra.mxu0 %v280
      %344 = vmatpush.msra.mxu0 %v278
      %345 = vmatpush.msra.mxu0 %v276
      %346 = vmatpush.msra.mxu0 %v274
      %347 = vmatmul.f32.gmra.mxu0 %v309
      %v348 = vpop.f32.mrf.mxu0
      %v349 = vadd.f32 %v305, %v348
      %350 = vdwg.mxu0
      %v351 = vmax.f32 %v329, 0.0
      %v352 = vmax.f32 %v349, 0.0
      %353 = vrot.lane.b32.xlu0 %v351, 73
      %v354 = vpop.permute.xlu0 %353
      %355 = vrot.lane.b32.xlu0 %v352, 73
      %v356 = vpop.permute.xlu0 %355
      %v357 = vlaneseq
      %v358 = vand.u32 %v357, 127
      %vm359 = vcmp.lt.s32.totalorder %v358, 73
      %v360 = vsel %vm359, %v354, %v356
      %v361 = vsel %vm359, %v356, %v354
      %v362 = vld [vmem:[%s5] ss:$8 sm:$0x3]
      %v364 = vperm.slane %v362, 0
      %v365 = vperm.slane %v362, 1
      %v368 = vmul.f32 %v361, %v364
      %v369 = vmul.f32 %v360, %v365
      %370 = vst [vmem:[#allocation2] sm:$0xff] %v368
      %371 = vst [vmem:[#allocation2 + $0x8] sm:$0xff] %v369
      %372 = vrot.lane.b32.xlu0 %v351, 72
      %v373 = vpop.permute.xlu0 %372
      %374 = vrot.lane.b32.xlu0 %v352, 72
      %v375 = vpop.permute.xlu0 %374
      %vm376 = vcmp.lt.s32.totalorder %v358, 72
      %v377 = vsel %vm376, %v373, %v375
      %v378 = vsel %vm376, %v375, %v373
      %s379 = scalar_lea.vmem %s5, 1
      %v380 = vld [vmem:[%s379] ss:$8 sm:$0x3]
      %v382 = vperm.slane %v380, 0
      %v383 = vperm.slane %v380, 1
      %v386 = vmul.f32 %v378, %v382
      %v387 = vmul.f32 %v377, %v383
      %388 = vst [vmem:[#allocation2 + $0x10] sm:$0xff] %v386
      %389 = vst [vmem:[#allocation2 + $0x18] sm:$0xff] %v387
      %390 = vrot.lane.b32.xlu0 %v351, 71
      %v391 = vpop.permute.xlu0 %390
      %392 = vrot.lane.b32.xlu0 %v352, 71
      %v393 = vpop.permute.xlu0 %392
      %vm394 = vcmp.lt.s32.totalorder %v358, 71
      %v395 = vsel %vm394, %v391, %v393
      %v396 = vsel %vm394, %v393, %v391
      %s397 = scalar_lea.vmem %s5, 2
      %v398 = vld [vmem:[%s397] ss:$8 sm:$0x3]
      %v400 = vperm.slane %v398, 0
      %v401 = vperm.slane %v398, 1
      %v404 = vmul.f32 %v396, %v400
      %v405 = vmul.f32 %v395, %v401
      %406 = vst [vmem:[#allocation2 + $0x20] sm:$0xff] %v404
      %407 = vst [vmem:[#allocation2 + $0x28] sm:$0xff] %v405
      %408 = vrot.lane.b32.xlu0 %v351, 65
      %v409 = vpop.permute.xlu0 %408
      %410 = vrot.lane.b32.xlu0 %v352, 65
      %v411 = vpop.permute.xlu0 %410
      %vm412 = vcmp.lt.s32.totalorder %v358, 65
      %v413 = vsel %vm412, %v409, %v411
      %v414 = vsel %vm412, %v411, %v409
      %s415 = scalar_lea.vmem %s5, 3
      %v416 = vld [vmem:[%s415] ss:$8 sm:$0x3]
      %v418 = vperm.slane %v416, 0
      %v419 = vperm.slane %v416, 1
      %v422 = vmul.f32 %v414, %v418
      %v423 = vmul.f32 %v413, %v419
      %424 = vst [vmem:[#allocation2 + $0x30] sm:$0xff] %v422
      %425 = vst [vmem:[#allocation2 + $0x38] sm:$0xff] %v423
      %426 = vrot.lane.b32.xlu0 %v351, 64
      %v427 = vpop.permute.xlu0 %426
      %428 = vrot.lane.b32.xlu0 %v352, 64
      %v429 = vpop.permute.xlu0 %428
      %vm430 = vcmp.lt.s32.totalorder %v358, 64
      %v431 = vsel %vm430, %v427, %v429
      %v432 = vsel %vm430, %v429, %v427
      %s433 = scalar_lea.vmem %s5, 4
      %v434 = vld [vmem:[%s433] ss:$8 sm:$0x3]
      %v436 = vperm.slane %v434, 0
      %v437 = vperm.slane %v434, 1
      %v440 = vmul.f32 %v432, %v436
      %v441 = vmul.f32 %v431, %v437
      %442 = vst [vmem:[#allocation2 + $0x40] sm:$0xff] %v440
      %443 = vst [vmem:[#allocation2 + $0x48] sm:$0xff] %v441
      %444 = vrot.lane.b32.xlu0 %v351, 63
      %v445 = vpop.permute.xlu0 %444
      %446 = vrot.lane.b32.xlu0 %v352, 63
      %v447 = vpop.permute.xlu0 %446
      %vm448 = vcmp.lt.s32.totalorder %v358, 63
      %v449 = vsel %vm448, %v445, %v447
      %v450 = vsel %vm448, %v447, %v445
      %s451 = scalar_lea.vmem %s5, 5
      %v452 = vld [vmem:[%s451] ss:$8 sm:$0x3]
      %v454 = vperm.slane %v452, 0
      %v455 = vperm.slane %v452, 1
      %v458 = vmul.f32 %v450, %v454
      %v459 = vmul.f32 %v449, %v455
      %460 = vst [vmem:[#allocation2 + $0x50] sm:$0xff] %v458
      %461 = vst [vmem:[#allocation2 + $0x58] sm:$0xff] %v459
      %462 = vrot.lane.b32.xlu0 %v351, 57
      %v463 = vpop.permute.xlu0 %462
      %464 = vrot.lane.b32.xlu0 %v352, 57
      %v465 = vpop.permute.xlu0 %464
      %vm466 = vcmp.lt.s32.totalorder %v358, 57
      %v467 = vsel %vm466, %v463, %v465
      %v468 = vsel %vm466, %v465, %v463
      %s469 = scalar_lea.vmem %s5, 6
      %v470 = vld [vmem:[%s469] ss:$8 sm:$0x3]
      %v472 = vperm.slane %v470, 0
      %v473 = vperm.slane %v470, 1
      %v476 = vmul.f32 %v468, %v472
      %v477 = vmul.f32 %v467, %v473
      %478 = vst [vmem:[#allocation2 + $0x60] sm:$0xff] %v476
      %479 = vst [vmem:[#allocation2 + $0x68] sm:$0xff] %v477
      %480 = vrot.lane.b32.xlu0 %v351, 56
      %v481 = vpop.permute.xlu0 %480
      %482 = vrot.lane.b32.xlu0 %v352, 56
      %v483 = vpop.permute.xlu0 %482
      %vm484 = vcmp.lt.s32.totalorder %v358, 56
      %v485 = vsel %vm484, %v481, %v483
      %v486 = vsel %vm484, %v483, %v481
      %s487 = scalar_lea.vmem %s5, 7
      %v488 = vld [vmem:[%s487] ss:$8 sm:$0x3]
      %v490 = vperm.slane %v488, 0
      %v491 = vperm.slane %v488, 1
      %v494 = vmul.f32 %v486, %v490
      %v495 = vmul.f32 %v485, %v491
      %496 = vst [vmem:[#allocation2 + $0x70] sm:$0xff] %v494
      %497 = vst [vmem:[#allocation2 + $0x78] sm:$0xff] %v495
      %498 = vrot.lane.b32.xlu0 %v351, 55
      %v499 = vpop.permute.xlu0 %498
      %500 = vrot.lane.b32.xlu0 %v352, 55
      %v501 = vpop.permute.xlu0 %500
      %vm502 = vcmp.lt.s32.totalorder %v358, 55
      %v503 = vsel %vm502, %v499, %v501
      %v504 = vsel %vm502, %v501, %v499
      %s505 = scalar_lea.vmem %s5, 16
      %v506 = vld [vmem:[%s505] ss:$8 sm:$0x3]
      %v508 = vperm.slane %v506, 0
      %v509 = vperm.slane %v506, 1
      %v512 = vmul.f32 %v504, %v508
      %v513 = vmul.f32 %v503, %v509
      %514 = vst [vmem:[#allocation2 + $0x80] sm:$0xff] %v512
      %515 = vst [vmem:[#allocation2 + $0x88] sm:$0xff] %v513
      %516 = vrot.lane.b32.xlu0 %v351, 9
      %v517 = vpop.permute.xlu0 %516
      %518 = vrot.lane.b32.xlu0 %v352, 9
      %v519 = vpop.permute.xlu0 %518
      %vm520 = vcmp.lt.s32.totalorder %v358, 9
      %v521 = vsel %vm520, %v517, %v519
      %v522 = vsel %vm520, %v519, %v517
      %s523 = scalar_lea.vmem %s5, 17
      %v524 = vld [vmem:[%s523] ss:$8 sm:$0x3]
      %v526 = vperm.slane %v524, 0
      %v527 = vperm.slane %v524, 1
      %v530 = vmul.f32 %v522, %v526
      %v531 = vmul.f32 %v521, %v527
      %532 = vst [vmem:[#allocation2 + $0x90] sm:$0xff] %v530
      %533 = vst [vmem:[#allocation2 + $0x98] sm:$0xff] %v531
      %534 = vrot.lane.b32.xlu0 %v351, 8
      %v535 = vpop.permute.xlu0 %534
      %536 = vrot.lane.b32.xlu0 %v352, 8
      %v537 = vpop.permute.xlu0 %536
      %vm538 = vcmp.lt.s32.totalorder %v358, 8
      %v539 = vsel %vm538, %v535, %v537
      %v540 = vsel %vm538, %v537, %v535
      %s541 = scalar_lea.vmem %s5, 18
      %v542 = vld [vmem:[%s541] ss:$8 sm:$0x3]
      %v544 = vperm.slane %v542, 0
      %v545 = vperm.slane %v542, 1
      %v548 = vmul.f32 %v540, %v544
      %v549 = vmul.f32 %v539, %v545
      %550 = vst [vmem:[#allocation2 + $0xa0] sm:$0xff] %v548
      %551 = vst [vmem:[#allocation2 + $0xa8] sm:$0xff] %v549
      %552 = vrot.lane.b32.xlu0 %v351, 7
      %v553 = vpop.permute.xlu0 %552
      %554 = vrot.lane.b32.xlu0 %v352, 7
      %v555 = vpop.permute.xlu0 %554
      %vm556 = vcmp.lt.s32.totalorder %v358, 7
      %v557 = vsel %vm556, %v553, %v555
      %v558 = vsel %vm556, %v555, %v553
      %s559 = scalar_lea.vmem %s5, 19
      %v560 = vld [vmem:[%s559] ss:$8 sm:$0x3]
      %v562 = vperm.slane %v560, 0
      %v563 = vperm.slane %v560, 1
      %v566 = vmul.f32 %v558, %v562
      %v567 = vmul.f32 %v557, %v563
      %568 = vst [vmem:[#allocation2 + $0xb0] sm:$0xff] %v566
      %569 = vst [vmem:[#allocation2 + $0xb8] sm:$0xff] %v567
      %570 = vrot.lane.b32.xlu0 %v351, 1
      %v571 = vpop.permute.xlu0 %570
      %572 = vrot.lane.b32.xlu0 %v352, 1
      %v573 = vpop.permute.xlu0 %572
      %vm574 = vcmp.lt.s32.totalorder %v358, 1
      %v575 = vsel %vm574, %v571, %v573
      %v576 = vsel %vm574, %v573, %v571
      %s577 = scalar_lea.vmem %s5, 20
      %v578 = vld [vmem:[%s577] ss:$8 sm:$0x3]
      %v580 = vperm.slane %v578, 0
      %v581 = vperm.slane %v578, 1
      %v584 = vmul.f32 %v576, %v580
      %v585 = vmul.f32 %v575, %v581
      %586 = vst [vmem:[#allocation2 + $0xc0] sm:$0xff] %v584
      %587 = vst [vmem:[#allocation2 + $0xc8] sm:$0xff] %v585
      %s588 = scalar_lea.vmem %s5, 21
      %v589 = vld [vmem:[%s588] ss:$8 sm:$0x3]
      %v591 = vperm.slane %v589, 0
      %v592 = vperm.slane %v589, 1
      %v595 = vmul.f32 %v351, %v591
      %v596 = vmul.f32 %v352, %v592
      %597 = vst [vmem:[#allocation2 + $0xd0] sm:$0xff] %v595
      %598 = vst [vmem:[#allocation2 + $0xd8] sm:$0xff] %v596
      %599 = vrot.lane.b32.xlu0 %v351, 127
      %v600 = vpop.permute.xlu0 %599
      %601 = vrot.lane.b32.xlu0 %v352, 127
      %v602 = vpop.permute.xlu0 %601
      %vm603 = vcmp.lt.s32.totalorder %v358, 127
      %v604 = vsel %vm603, %v600, %v602
      %v605 = vsel %vm603, %v602, %v600
      %s606 = scalar_lea.vmem %s5, 22
      %v607 = vld [vmem:[%s606] ss:$8 sm:$0x3]
      %v609 = vperm.slane %v607, 0
      %v610 = vperm.slane %v607, 1
      %v613 = vmul.f32 %v604, %v609
      %v614 = vmul.f32 %v605, %v610
      %615 = vst [vmem:[#allocation2 + $0xe0] sm:$0xff] %v613
      %616 = vst [vmem:[#allocation2 + $0xe8] sm:$0xff] %v614
      %617 = vrot.lane.b32.xlu0 %v351, 121
      %v618 = vpop.permute.xlu0 %617
      %619 = vrot.lane.b32.xlu0 %v352, 121
      %v620 = vpop.permute.xlu0 %619
      %vm621 = vcmp.lt.s32.totalorder %v358, 121
      %v622 = vsel %vm621, %v618, %v620
      %v623 = vsel %vm621, %v620, %v618
      %s624 = scalar_lea.vmem %s5, 23
      %v625 = vld [vmem:[%s624] ss:$8 sm:$0x3]
      %v627 = vperm.slane %v625, 0
      %v628 = vperm.slane %v625, 1
      %v631 = vmul.f32 %v622, %v627
      %v632 = vmul.f32 %v623, %v628
      %633 = vst [vmem:[#allocation2 + $0xf0] sm:$0xff] %v631
      %634 = vst [vmem:[#allocation2 + $0xf8] sm:$0xff] %v632
      %635 = vrot.lane.b32.xlu0 %v351, 120
      %v636 = vpop.permute.xlu0 %635
      %637 = vrot.lane.b32.xlu0 %v352, 120
      %v638 = vpop.permute.xlu0 %637
      %vm639 = vcmp.lt.s32.totalorder %v358, 120
      %v640 = vsel %vm639, %v636, %v638
      %v641 = vsel %vm639, %v638, %v636
      %s642 = scalar_lea.vmem %s5, 32
      %v643 = vld [vmem:[%s642] ss:$8 sm:$0x3]
      %v645 = vperm.slane %v643, 0
      %v646 = vperm.slane %v643, 1
      %v649 = vmul.f32 %v640, %v645
      %v650 = vmul.f32 %v641, %v646
      %651 = vst [vmem:[#allocation2 + $0x100] sm:$0xff] %v649
      %652 = vst [vmem:[#allocation2 + $0x108] sm:$0xff] %v650
      %653 = vrot.lane.b32.xlu0 %v351, 119
      %v654 = vpop.permute.xlu0 %653
      %655 = vrot.lane.b32.xlu0 %v352, 119
      %v656 = vpop.permute.xlu0 %655
      %vm657 = vcmp.lt.s32.totalorder %v358, 119
      %v658 = vsel %vm657, %v654, %v656
      %v659 = vsel %vm657, %v656, %v654
      %s660 = scalar_lea.vmem %s5, 33
      %v661 = vld [vmem:[%s660] ss:$8 sm:$0x3]
      %v663 = vperm.slane %v661, 0
      %v664 = vperm.slane %v661, 1
      %v667 = vmul.f32 %v658, %v663
      %v668 = vmul.f32 %v659, %v664
      %669 = vst [vmem:[#allocation2 + $0x110] sm:$0xff] %v667
      %670 = vst [vmem:[#allocation2 + $0x118] sm:$0xff] %v668
      %s671 = scalar_lea.vmem %s5, 34
      %v672 = vld [vmem:[%s671] ss:$8 sm:$0x3]
      %v674 = vperm.slane %v672, 0
      %v675 = vperm.slane %v672, 1
      %v678 = vmul.f32 %v360, %v674
      %v679 = vmul.f32 %v361, %v675
      %680 = vst [vmem:[#allocation2 + $0x120] sm:$0xff] %v678
      %681 = vst [vmem:[#allocation2 + $0x128] sm:$0xff] %v679
      %s682 = scalar_lea.vmem %s5, 35
      %v683 = vld [vmem:[%s682] ss:$8 sm:$0x3]
      %v685 = vperm.slane %v683, 0
      %v686 = vperm.slane %v683, 1
      %v689 = vmul.f32 %v377, %v685
      %v690 = vmul.f32 %v378, %v686
      %691 = vst [vmem:[#allocation2 + $0x130] sm:$0xff] %v689
      %692 = vst [vmem:[#allocation2 + $0x138] sm:$0xff] %v690
      %s693 = scalar_lea.vmem %s5, 36
      %v694 = vld [vmem:[%s693] ss:$8 sm:$0x3]
      %v696 = vperm.slane %v694, 0
      %v697 = vperm.slane %v694, 1
      %v700 = vmul.f32 %v395, %v696
      %v701 = vmul.f32 %v396, %v697
      %702 = vst [vmem:[#allocation2 + $0x140] sm:$0xff] %v700
      %703 = vst [vmem:[#allocation2 + $0x148] sm:$0xff] %v701
      %s704 = scalar_lea.vmem %s5, 37
      %v705 = vld [vmem:[%s704] ss:$8 sm:$0x3]
      %v707 = vperm.slane %v705, 0
      %v708 = vperm.slane %v705, 1
      %v711 = vmul.f32 %v413, %v707
      %v712 = vmul.f32 %v414, %v708
      %713 = vst [vmem:[#allocation2 + $0x150] sm:$0xff] %v711
      %714 = vst [vmem:[#allocation2 + $0x158] sm:$0xff] %v712
      %s715 = scalar_lea.vmem %s5, 38
      %v716 = vld [vmem:[%s715] ss:$8 sm:$0x3]
      %v718 = vperm.slane %v716, 0
      %v719 = vperm.slane %v716, 1
      %v722 = vmul.f32 %v431, %v718
      %v723 = vmul.f32 %v432, %v719
      %724 = vst [vmem:[#allocation2 + $0x160] sm:$0xff] %v722
      %725 = vst [vmem:[#allocation2 + $0x168] sm:$0xff] %v723
      %s726 = scalar_lea.vmem %s5, 39
      %v727 = vld [vmem:[%s726] ss:$8 sm:$0x3]
      %v729 = vperm.slane %v727, 0
      %v730 = vperm.slane %v727, 1
      %v733 = vmul.f32 %v449, %v729
      %v734 = vmul.f32 %v450, %v730
      %735 = vst [vmem:[#allocation2 + $0x170] sm:$0xff] %v733
      %736 = vst [vmem:[#allocation2 + $0x178] sm:$0xff] %v734
      %s737 = scalar_lea.vmem %s5, 48
      %v738 = vld [vmem:[%s737] ss:$8 sm:$0x3]
      %v740 = vperm.slane %v738, 0
      %v741 = vperm.slane %v738, 1
      %v744 = vmul.f32 %v467, %v740
      %v745 = vmul.f32 %v468, %v741
      %746 = vst [vmem:[#allocation2 + $0x180] sm:$0xff] %v744
      %747 = vst [vmem:[#allocation2 + $0x188] sm:$0xff] %v745
      %s748 = scalar_lea.vmem %s5, 49
      %v749 = vld [vmem:[%s748] ss:$8 sm:$0x3]
      %v751 = vperm.slane %v749, 0
      %v752 = vperm.slane %v749, 1
      %v755 = vmul.f32 %v485, %v751
      %v756 = vmul.f32 %v486, %v752
      %757 = vst [vmem:[#allocation2 + $0x190] sm:$0xff] %v755
      %758 = vst [vmem:[#allocation2 + $0x198] sm:$0xff] %v756
      %s759 = scalar_lea.vmem %s5, 50
      %v760 = vld [vmem:[%s759] ss:$8 sm:$0x3]
      %v762 = vperm.slane %v760, 0
      %v763 = vperm.slane %v760, 1
      %v766 = vmul.f32 %v503, %v762
      %v767 = vmul.f32 %v504, %v763
      %768 = vst [vmem:[#allocation2 + $0x1a0] sm:$0xff] %v766
      %769 = vst [vmem:[#allocation2 + $0x1a8] sm:$0xff] %v767
      %v770 = vld [vmem:[%s266] sm:$0xff]
      %v771 = vld [vmem:[%s266 + $0x8] sm:$0xff]
      %772 = vst [vmem:[#allocation2 + $0x1b0] sm:$0xff] %v770
      %773 = vst [vmem:[#allocation2 + $0x1b8] sm:$0xff] %v771
      %v774 = vld [vmem:[%s3] sm:$0xff]
      %v775 = vld [vmem:[%s3 + $0x8] sm:$0xff]
      %v776 = vld [vmem:[#allocation2] sm:$0xff]
      %v777 = vld [vmem:[#allocation2 + $0x8] sm:$0xff]
      %v778 = vld [vmem:[#allocation2 + $0x10] sm:$0xff]
      %v779 = vld [vmem:[#allocation2 + $0x18] sm:$0xff]
      %v780 = vld [vmem:[#allocation2 + $0x20] sm:$0xff]
      %v781 = vld [vmem:[#allocation2 + $0x28] sm:$0xff]
      %v782 = vld [vmem:[#allocation2 + $0x30] sm:$0xff]
      %v783 = vld [vmem:[#allocation2 + $0x38] sm:$0xff]
      %v784 = vld [vmem:[#allocation2 + $0x40] sm:$0xff]
      %v785 = vld [vmem:[#allocation2 + $0x48] sm:$0xff]
      %v786 = vld [vmem:[#allocation2 + $0x50] sm:$0xff]
      %v787 = vld [vmem:[#allocation2 + $0x58] sm:$0xff]
      %v788 = vld [vmem:[#allocation2 + $0x60] sm:$0xff]
      %v789 = vld [vmem:[#allocation2 + $0x68] sm:$0xff]
      %v790 = vld [vmem:[#allocation2 + $0x70] sm:$0xff]
      %v791 = vld [vmem:[#allocation2 + $0x78] sm:$0xff]
      %v792 = vld [vmem:[#allocation2 + $0x80] sm:$0xff]
      %v793 = vld [vmem:[#allocation2 + $0x88] sm:$0xff]
      %v794 = vld [vmem:[#allocation2 + $0x90] sm:$0xff]
      %v795 = vld [vmem:[#allocation2 + $0x98] sm:$0xff]
      %v796 = vld [vmem:[#allocation2 + $0xa0] sm:$0xff]
      %v797 = vld [vmem:[#allocation2 + $0xa8] sm:$0xff]
      %v798 = vld [vmem:[#allocation2 + $0xb0] sm:$0xff]
      %v799 = vld [vmem:[#allocation2 + $0xb8] sm:$0xff]
      %v800 = vld [vmem:[#allocation2 + $0xc0] sm:$0xff]
      %v801 = vld [vmem:[#allocation2 + $0xc8] sm:$0xff]
      %v802 = vld [vmem:[#allocation2 + $0xd0] sm:$0xff]
      %v803 = vld [vmem:[#allocation2 + $0xd8] sm:$0xff]
      %v804 = vld [vmem:[#allocation2 + $0xe0] sm:$0xff]
      %v805 = vld [vmem:[#allocation2 + $0xe8] sm:$0xff]
      %v806 = vld [vmem:[#allocation2 + $0xf0] sm:$0xff]
      %v807 = vld [vmem:[#allocation2 + $0xf8] sm:$0xff]
      %v808 = vld [vmem:[#allocation2 + $0x100] sm:$0xff]
      %v809 = vld [vmem:[#allocation2 + $0x108] sm:$0xff]
      %v810 = vld [vmem:[#allocation2 + $0x110] sm:$0xff]
      %v811 = vld [vmem:[#allocation2 + $0x118] sm:$0xff]
      %v812 = vld [vmem:[#allocation2 + $0x120] sm:$0xff]
      %v813 = vld [vmem:[#allocation2 + $0x128] sm:$0xff]
      %v814 = vld [vmem:[#allocation2 + $0x130] sm:$0xff]
      %v815 = vld [vmem:[#allocation2 + $0x138] sm:$0xff]
      %v816 = vld [vmem:[#allocation2 + $0x140] sm:$0xff]
      %v817 = vld [vmem:[#allocation2 + $0x148] sm:$0xff]
      %v818 = vld [vmem:[#allocation2 + $0x150] sm:$0xff]
      %v819 = vld [vmem:[#allocation2 + $0x158] sm:$0xff]
      %v820 = vld [vmem:[#allocation2 + $0x160] sm:$0xff]
      %v821 = vld [vmem:[#allocation2 + $0x168] sm:$0xff]
      %v822 = vld [vmem:[#allocation2 + $0x170] sm:$0xff]
      %v823 = vld [vmem:[#allocation2 + $0x178] sm:$0xff]
      %v824 = vld [vmem:[#allocation2 + $0x180] sm:$0xff]
      %v825 = vld [vmem:[#allocation2 + $0x188] sm:$0xff]
      %v826 = vld [vmem:[#allocation2 + $0x190] sm:$0xff]
      %v827 = vld [vmem:[#allocation2 + $0x198] sm:$0xff]
      %v828 = vld [vmem:[#allocation2 + $0x1a0] sm:$0xff]
      %v829 = vld [vmem:[#allocation2 + $0x1a8] sm:$0xff]
      %v830 = vld [vmem:[#allocation2 + $0x1b0] sm:$0xff]
      %v831 = vld [vmem:[#allocation2 + $0x1b8] sm:$0xff]
      %v832 = vld [vmem:[%s4] sm:$0xff]
      %834 = vset.pattern.permute.xlu0 1
      %835 = vperm.xlu0 %834, %v832
      %v836 = vpop.permute.xlu0 %835
      %vm838 = vcmask 785408
      %v840 = vsel %vm838, %v775, 0
      %842 = vmatpush.msra.mxu0 %v806
      %843 = vmatpush.msra.mxu0 %v804
      %844 = vmatpush.msra.mxu0 %v802
      %845 = vmatpush.msra.mxu0 %v800
      %846 = vmatpush.msra.mxu0 %v798
      %847 = vmatpush.msra.mxu0 %v796
      %848 = vmatpush.msra.mxu0 %v794
      %849 = vmatpush.msra.mxu0 %v792
      %850 = vmatpush.msra.mxu0 %v790
      %851 = vmatpush.msra.mxu0 %v788
      %852 = vmatpush.msra.mxu0 %v786
      %853 = vmatpush.msra.mxu0 %v784
      %854 = vmatpush.msra.mxu0 %v782
      %855 = vmatpush.msra.mxu0 %v780
      %856 = vmatpush.msra.mxu0 %v778
      %857 = vmatpush.msra.mxu0 %v776
      %858 = vmatmul.f32.gmra.mxu0 %v774
      %v859 = vpop.f32.mrf.mxu0
      %v860 = vadd.f32 %v836, %v859
      %861 = vdwg.mxu0
      %862 = vmatpush.msra.mxu0 0.0
      %863 = vmatpush.msra.mxu0 0.0
      %864 = vmatpush.msra.mxu0 0.0
      %865 = vmatpush.msra.mxu0 0.0
      %866 = vmatpush.msra.mxu0 %v830
      %867 = vmatpush.msra.mxu0 %v828
      %868 = vmatpush.msra.mxu0 %v826
      %869 = vmatpush.msra.mxu0 %v824
      %870 = vmatpush.msra.mxu0 %v822
      %871 = vmatpush.msra.mxu0 %v820
      %872 = vmatpush.msra.mxu0 %v818
      %873 = vmatpush.msra.mxu0 %v816
      %874 = vmatpush.msra.mxu0 %v814
      %875 = vmatpush.msra.mxu0 %v812
      %876 = vmatpush.msra.mxu0 %v810
      %877 = vmatpush.msra.mxu0 %v808
      %878 = vmatmul.f32.gmra.mxu0 %v840
      %v879 = vpop.f32.mrf.mxu0
      %v880 = vadd.f32 %v860, %v879
      %881 = vdwg.mxu0
      %882 = vmatpush.msra.mxu0 %v807
      %883 = vmatpush.msra.mxu0 %v805
      %884 = vmatpush.msra.mxu0 %v803
      %885 = vmatpush.msra.mxu0 %v801
      %886 = vmatpush.msra.mxu0 %v799
      %887 = vmatpush.msra.mxu0 %v797
      %888 = vmatpush.msra.mxu0 %v795
      %889 = vmatpush.msra.mxu0 %v793
      %890 = vmatpush.msra.mxu0 %v791
      %891 = vmatpush.msra.mxu0 %v789
      %892 = vmatpush.msra.mxu0 %v787
      %893 = vmatpush.msra.mxu0 %v785
      %894 = vmatpush.msra.mxu0 %v783
      %895 = vmatpush.msra.mxu0 %v781
      %896 = vmatpush.msra.mxu0 %v779
      %897 = vmatpush.msra.mxu0 %v777
      %898 = vmatmul.f32.gmra.mxu0 %v774
      %v899 = vpop.f32.mrf.mxu0
      %v900 = vadd.f32 %v836, %v899
      %901 = vdwg.mxu0
      %902 = vmatpush.msra.mxu0 0.0
      %903 = vmatpush.msra.mxu0 0.0
      %904 = vmatpush.msra.mxu0 0.0
      %905 = vmatpush.msra.mxu0 0.0
      %906 = vmatpush.msra.mxu0 %v831
      %907 = vmatpush.msra.mxu0 %v829
      %908 = vmatpush.msra.mxu0 %v827
      %909 = vmatpush.msra.mxu0 %v825
      %910 = vmatpush.msra.mxu0 %v823
      %911 = vmatpush.msra.mxu0 %v821
      %912 = vmatpush.msra.mxu0 %v819
      %913 = vmatpush.msra.mxu0 %v817
      %914 = vmatpush.msra.mxu0 %v815
      %915 = vmatpush.msra.mxu0 %v813
      %916 = vmatpush.msra.mxu0 %v811
      %917 = vmatpush.msra.mxu0 %v809
      %918 = vmatmul.f32.gmra.mxu0 %v840
      %v919 = vpop.f32.mrf.mxu0
      %v920 = vadd.f32 %v900, %v919
      %921 = vdwg.mxu0
      %v922 = vmax.f32 %v880, 0.0
      %v923 = vmax.f32 %v920, 0.0
      %924 = vst [vmem:[%s271] sm:$0xff] %v922
      %925 = vst [vmem:[%s271 + $0x8] sm:$0xff] %v923
      %p926 = scmp.lt.s32.totalorder %s17, 1
      %s927 = scalar_select %p926, %s17, 1
      %s928 = smul.addr %s927, 2
      %s929 = smul.addr %s928, 8
      %s930 = scalar_lea.vmem %s6, %s929
      // Predicated region
      $region45: #{resblock_forward.1} parent=43 // pred_check
        %p931 = pneg %p171
      $region46: #{resblock_forward.1} parent=43 // pred_check_branch
        %933 = sbr.rel (%p931) target = $region48
      $region47: #{resblock_forward.1} parent=43 // pred_region
        _
      $region48: #{resblock_forward.1} parent=43 // pred_fallthru
        _
    $region44: #{resblock_forward.1} parent=5 // pred_fallthru
      _
    %p934 = scmp.le.s32.totalorder 2, %s12
    // Predicated region
    $region49: #{resblock_forward.1} parent=5 // pred_check
      %p935 = pneg %p934
    $region50: #{resblock_forward.1} parent=5 // pred_check_branch
      %937 = sbr.rel (%p935) target = $region52
    $region51: #{resblock_forward.1} parent=5 // pred_region
      %s938 = ssub.s32 %s12, 2
      // Predicated region
      $region53: #{resblock_forward.1} parent=51 // pred_check
        %p939 = pneg %p177
      $region54: #{resblock_forward.1} parent=51 // pred_check_branch
        %941 = sbr.rel (%p939) target = $region56
      $region55: #{resblock_forward.1} parent=51 // pred_region
        %p942 = scmp.lt.s32.totalorder %s18, 1
        %s943 = scalar_select %p942, %s18, 1
        %s944 = smul.addr %s943, 2
        %s945 = smul.addr %s944, 8
        %s946 = scalar_lea.vmem %s6, %s945
      $region56: #{resblock_forward.1} parent=51 // pred_fallthru
        _
    $region52: #{resblock_forward.1} parent=5 // pred_fallthru
      _
  $region6: #{resblock_forward.1} parent=0 // loop_footer
    %s16 = sadd.s32 1, %s12
  $region7: #{resblock_forward.1} parent=0 // loop_footer_branch
    %11 = sbr.rel target = $region3
  $region8: #{resblock_forward.1} parent=0 // loop_exit
    _

</llo_original>
